<compile_context>
chip_gen: v6e
topology: v6e:2x2x1
jax: 0.10.0
libtpu: 0.0.40
codegen_flags: <defaults>
</compile_context>

<pallas_src>
import jax
import jax.numpy as jnp
from jax.experimental import pallas as pl
from jax.experimental.pallas import tpu as pltpu


def _skip_linear_kernel_inplace(x_ref, w_ref, b_ref, o_ref):
    # f32 output path: accumulate directly into the (k-invariant) output tile.
    #   x_ref : (tm, tk) tile of x, indexed (i, k)
    #   w_ref : (tk, tn) tile of W^T (in_dim, out_dim), indexed (k, j)
    #   b_ref : (1,  tn) tile of bias, indexed (0, j)
    #   o_ref : (tm, tn) output tile, indexed (i, j) -- resident across the k loop
    j = pl.program_id(1)
    k = pl.program_id(2)

    @pl.when(k == 0)
    def _():
        # Fold bias into the accumulator init (removes it from the epilogue).
        o_ref[...] = jnp.broadcast_to(b_ref[...].astype(o_ref.dtype), o_ref.shape)

    @pl.when(k == j)
    def _():
        # Skip connection: reuse the LHS tile (requires tn == tk, enforced in wrapper).
        o_ref[...] += x_ref[...].astype(o_ref.dtype)

    o_ref[...] += jnp.dot(x_ref[...], w_ref[...],
                          preferred_element_type=jnp.float32)


def _skip_linear_kernel_scratch(x_ref, w_ref, b_ref, o_ref, acc_ref):
    # Generic path (narrow output dtypes): f32 scratch accumulator, cast at the end.
    j = pl.program_id(1)
    k = pl.program_id(2)

    @pl.when(k == 0)
    def _():
        acc_ref[...] = jnp.broadcast_to(b_ref[...].astype(jnp.float32), acc_ref.shape)

    @pl.when(k == j)
    def _():
        acc_ref[...] += x_ref[...].astype(jnp.float32)

    acc_ref[...] += jnp.dot(x_ref[...], w_ref[...],
                            preferred_element_type=jnp.float32)

    @pl.when(k == pl.num_programs(2) - 1)
    def _():
        o_ref[...] = acc_ref[...].astype(o_ref.dtype)


def _pick_tile(n, candidates):
    for c in candidates:
        if c <= n and n % c == 0:
            return c
    return n  # fall back to the full dimension (legal for any shape)


def skip_connection_linear(x, weight, bias, *, tm=None, tn=None, tk=None,
                           use_bf16=False):
    """y = x + (x @ weight.T + bias).

    x: (B, D); weight: (out_dim, in_dim) [PyTorch convention]; bias: (out_dim,).
    Requires in_dim == out_dim (module constraint).
    """
    B, D = x.shape
    out_dim, in_dim = weight.shape
    assert in_dim == D and out_dim == D, (
        "SkipConectionLinear requires in_dim == out_dim == x.shape[1]")

    # ---- tile selection -------------------------------------------------------
    if tm is None:
        # Prefer >= 2 batch blocks so both v7x TensorCores get work.
        tm_cands = (1024, 512, 256, 128, 64, 32, 16, 8)
        for c in tm_cands:
            if c <= B // 2 and B % c == 0:
                tm = c
                break
        if tm is None:
            tm = _pick_tile(B, tm_cands)
    if tn is None:
        tn = _pick_tile(D, (512, 256, 128))   # lane-dense, MXU-filling feature tiles
    if tk is None:
        tk = tn
    assert B % tm == 0 and D % tn == 0 and D % tk == 0, "tiles must divide (B, D)"
    assert tn == tk, "skip-tile reuse (k == j) requires tn == tk"

    # ---- dtypes / weight layout ----------------------------------------------
    out_dtype = x.dtype
    w_t = weight.T                       # (in_dim, out_dim): one-time transpose
    if use_bf16:
        x_in = x.astype(jnp.bfloat16)    # bf16 DMA + native MXU rate, f32 accumulation
        w_in = w_t.astype(jnp.bfloat16)
    else:
        x_in = x
        w_in = w_t
    b2d = bias.reshape(1, out_dim)

    in_place = jnp.dtype(out_dtype) == jnp.dtype(jnp.float32)
    kernel = _skip_linear_kernel_inplace if in_place else _skip_linear_kernel_scratch
    scratch_shapes = [] if in_place else [pltpu.VMEM((tm, tn), jnp.float32)]

    # ---- generation-aware VMEM budget ----------------------------------------
    in_itemsize = jnp.dtype(x_in.dtype).itemsize
    out_itemsize = jnp.dtype(out_dtype).itemsize
    need = (2 * (tm * tk + tk * tn + tn) * in_itemsize   # double-buffered inputs
            + 2 * tm * tn * out_itemsize                 # double-buffered output
            + (0 if in_place else tm * tn * 4))          # f32 scratch accumulator
    vmem_budget = max(int(1.5 * need), 4 << 20)
    try:
        vmem_cap = int(pltpu.get_tpu_info().vmem_capacity_bytes)
    except Exception:
        vmem_cap = 64 << 20
    # ~40 MiB ceiling on 64-MiB parts (v7x, compiler scratch headroom), ~100 MiB on
    # 128-MiB parts (v5e/v6e).
    ceiling = (40 << 20) if vmem_cap <= (64 << 20) else (100 << 20)
    vmem_budget = min(vmem_budget, ceiling)

    # ---- cost estimate: actual re-streamed HBM traffic ------------------------
    cost = pl.CostEstimate(
        flops=2 * B * D * D,
        transcendentals=0,
        bytes_accessed=int(((B // tm) * D * D        # weight, re-streamed per i-row
                            + (D // tn) * B * D      # x LHS, re-streamed per j-col
                            + 2 * B * D)             # skip read (fused) + output write
                           * in_itemsize))

    return pl.pallas_call(
        kernel,
        out_shape=jax.ShapeDtypeStruct((B, D), out_dtype),
        grid_spec=pltpu.PrefetchScalarGridSpec(
            num_scalar_prefetch=0,
            grid=(B // tm, D // tn, D // tk),
            in_specs=[
                pl.BlockSpec((tm, tk), lambda i, j, k: (i, k)),   # x (matmul LHS + skip)
                pl.BlockSpec((tk, tn), lambda i, j, k: (k, j)),   # W^T (in_dim, out_dim)
                pl.BlockSpec((1, tn), lambda i, j, k: (0, j)),    # bias
            ],
            out_specs=pl.BlockSpec((tm, tn), lambda i, j, k: (i, j)),
            scratch_shapes=scratch_shapes,
        ),
        compiler_params=pltpu.CompilerParams(
            dimension_semantics=("parallel", "parallel", "arbitrary"),
            vmem_limit_bytes=vmem_budget),
        cost_estimate=cost,
    )(x_in, w_in, b2d)


if __name__ == "__main__":
    # Module constraint: in_dim == out_dim. Lane-dense features; sized so the tiled
    # path exercises both a large-tile grid and a multi-step (i, j, k) grid.
    batch, dim = 256, 512

    key = jax.random.PRNGKey(0)
    kx, kw, kb = jax.random.split(key, 3)

    x = jax.random.normal(kx, (batch, dim), dtype=jnp.float32)

    # Deterministic init mirroring nn.Linear defaults: U(-1/sqrt(in_dim), 1/sqrt(in_dim)).
    bound = 1.0 / (dim ** 0.5)
    weight = jax.random.uniform(kw, (dim, dim), minval=-bound, maxval=bound,
                                dtype=jnp.float32)  # (out_dim, in_dim)
    bias = jax.random.uniform(kb, (dim,), minval=-bound, maxval=bound,
                              dtype=jnp.float32)

    # Reference (same semantics as the PyTorch forward).
    ref = x + (x @ weight.T + bias)

    # 1) Default large-tile path: tm=128 (>=2 batch blocks), tn=tk=512 -> grid (2, 1, 1).
    out = jax.block_until_ready(skip_connection_linear(x, weight, bias))
    assert out.shape == ref.shape
    assert jnp.allclose(out, ref, atol=2e-4, rtol=1e-5), "mismatch vs reference (default tiles)"

    # 2) Multi-block path exercising the k==j skip reuse off the first k step:
    #    tm=128, tn=tk=256 -> grid (2, 2, 2).
    out2 = jax.block_until_ready(
        skip_connection_linear(x, weight, bias, tm=128, tn=256, tk=256))
    assert jnp.allclose(out2, ref, atol=2e-4, rtol=1e-5), "mismatch vs reference (small tiles)"

    print("KERNEL_OK")
</pallas_src>

<mosaic_0001>
module attributes {stable_mosaic.version = 11 : i64} {
  func.func @_skip_linear_kernel_inplace(%arg0: i32, %arg1: i32, %arg2: i32, %arg3: memref<128x512xf32, #tpu.memory_space<vmem>>, %arg4: memref<512x512xf32, #tpu.memory_space<vmem>>, %arg5: memref<1x512xf32, #tpu.memory_space<vmem>>, %arg6: memref<128x512xf32, #tpu.memory_space<vmem>>) attributes {dimension_semantics = [#tpu.dimension_semantics<parallel>, #tpu.dimension_semantics<parallel>, #tpu.dimension_semantics<arbitrary>], iteration_bounds = array<i64: 2, 1, 1>, scalar_prefetch = 0 : i64, scratch_operands = 0 : i64, tpu.core_type = #tpu.core_type<tc>, window_params = [{transform_indices = @transform_0, window_bounds = array<i64: 128, 512>}, {transform_indices = @transform_1, window_bounds = array<i64: 512, 512>}, {transform_indices = @transform_2, window_bounds = array<i64: 1, 512>}, {transform_indices = @transform_3, window_bounds = array<i64: 128, 512>}]} {
    %c0_i32 = arith.constant 0 : i32
    %0 = arith.cmpi eq, %arg2, %c0_i32 : i32
    %1 = arith.extui %0 : i1 to i32
    %c0_i32_0 = arith.constant 0 : i32
    %2 = arith.cmpi ne, %1, %c0_i32_0 : i32
    scf.if %2 {
      %c0_9 = arith.constant 0 : index
      %c0_10 = arith.constant 0 : index
      %12 = vector.load %arg5[%c0_9, %c0_10] : memref<1x512xf32, #tpu.memory_space<vmem>>, vector<1x512xf32>
      %13 = vector.shape_cast %12 : vector<1x512xf32> to vector<1x512xf32>
      %14 = vector.broadcast %13 : vector<1x512xf32> to vector<128x512xf32>
      %c0_11 = arith.constant 0 : index
      %c0_12 = arith.constant 0 : index
      %15 = vector.load %arg6[%c0_11, %c0_12] : memref<128x512xf32, #tpu.memory_space<vmem>>, vector<128x512xf32>
      tpu.vector_store %arg6[%c0_11, %c0_12], %14 {strides = array<i32>} : memref<128x512xf32, #tpu.memory_space<vmem>>, vector<128x512xf32>,
    } else {
    }
    %3 = arith.cmpi eq, %arg2, %arg1 : i32
    %4 = arith.extui %3 : i1 to i32
    %c0_i32_1 = arith.constant 0 : i32
    %5 = arith.cmpi ne, %4, %c0_i32_1 : i32
    scf.if %5 {
      %c0_9 = arith.constant 0 : index
      %c0_10 = arith.constant 0 : index
      %12 = vector.load %arg6[%c0_9, %c0_10] : memref<128x512xf32, #tpu.memory_space<vmem>>, vector<128x512xf32>
      %c0_11 = arith.constant 0 : index
      %c0_12 = arith.constant 0 : index
      %13 = vector.load %arg3[%c0_11, %c0_12] : memref<128x512xf32, #tpu.memory_space<vmem>>, vector<128x512xf32>
      %14 = arith.addf %12, %13 : vector<128x512xf32>
      %c0_13 = arith.constant 0 : index
      %c0_14 = arith.constant 0 : index
      %15 = vector.load %arg6[%c0_13, %c0_14] : memref<128x512xf32, #tpu.memory_space<vmem>>, vector<128x512xf32>
      tpu.vector_store %arg6[%c0_13, %c0_14], %14 {strides = array<i32>} : memref<128x512xf32, #tpu.memory_space<vmem>>, vector<128x512xf32>,
    } else {
    }
    %c0 = arith.constant 0 : index
    %c0_2 = arith.constant 0 : index
    %6 = vector.load %arg6[%c0, %c0_2] : memref<128x512xf32, #tpu.memory_space<vmem>>, vector<128x512xf32>
    %c0_3 = arith.constant 0 : index
    %c0_4 = arith.constant 0 : index
    %7 = vector.load %arg3[%c0_3, %c0_4] : memref<128x512xf32, #tpu.memory_space<vmem>>, vector<128x512xf32>
    %c0_5 = arith.constant 0 : index
    %c0_6 = arith.constant 0 : index
    %8 = vector.load %arg4[%c0_5, %c0_6] : memref<512x512xf32, #tpu.memory_space<vmem>>, vector<512x512xf32>
    %cst = arith.constant dense<0.000000e+00> : vector<128x512xf32>
    %9 = tpu.matmul %7, %8, %cst {dimension_numbers = #tpu.dot_dimension_numbers<[1], [0], [0], [1], [0, 0, 1, 1], [], []>} : vector<128x512xf32>, vector<512x512xf32>, vector<128x512xf32> -> vector<128x512xf32>
    %10 = arith.addf %6, %9 : vector<128x512xf32>
    %c0_7 = arith.constant 0 : index
    %c0_8 = arith.constant 0 : index
    %11 = vector.load %arg6[%c0_7, %c0_8] : memref<128x512xf32, #tpu.memory_space<vmem>>, vector<128x512xf32>
    tpu.vector_store %arg6[%c0_7, %c0_8], %10 {strides = array<i32>} : memref<128x512xf32, #tpu.memory_space<vmem>>, vector<128x512xf32>,
    return
  }
  func.func @transform_0(%arg0: i32, %arg1: i32, %arg2: i32) -> (i32, i32) {
    %c0_i32 = arith.constant 0 : i32
    return %arg0, %arg2 : i32, i32
  }
  func.func @transform_1(%arg0: i32, %arg1: i32, %arg2: i32) -> (i32, i32) {
    %c0_i32 = arith.constant 0 : i32
    return %arg2, %arg1 : i32, i32
  }
  func.func @transform_2(%arg0: i32, %arg1: i32, %arg2: i32) -> (i32, i32) {
    %c0_i32 = arith.constant 0 : i32
    %c0_i32_0 = arith.constant 0 : i32
    return %c0_i32, %arg1 : i32, i32
  }
  func.func @transform_3(%arg0: i32, %arg1: i32, %arg2: i32) -> (i32, i32) {
    %c0_i32 = arith.constant 0 : i32
    return %arg0, %arg1 : i32, i32
  }
}

</mosaic_0001>

<llo_original>
// kernel: tpu_custom_call.1
$region0: #{tpu_custom_call.1}
  #allocation0 [shape = 'u32[]', space=smem, size = 0x4, offset = 0x4, fixed_abs, tag = 'smem constant byte address 0x4 - core index']
  #allocation1 [shape = 'u32[144,128]{1,0:T(1,128)}', space=vmem, size = 0x12000, scoped, tag = 'internal scratch']
  %s0 = inlined_call_operand.hbm [shape: f32[256,512], index: 0, kind: input, shape index: {}]
  %s1 = inlined_call_operand.hbm [shape: f32[512,512], index: 1, kind: input, shape index: {}]
  %s2 = inlined_call_operand.hbm [shape: f32[1,512], index: 2, kind: input, shape index: {}]
  %s3 = inlined_call_operand.hbm [shape: f32[256,512], index: 3, kind: output, shape index: {}]
  %s4 = sld [smem:[#allocation0]]
  $region65: #{tpu_custom_call.1} parent=0
    _
  %s6 = ssub.s32 1, %s4
  %s7 = scalar_select 0, %s6, %s4
  $region1: #{tpu_custom_call.1} parent=0
    #allocation2 [shape = 'u8[524288]{0}', space=vmem, size = 0x80000, scoped, tag = 'input window, operand 0']
    #allocation3 [shape = 's32[2]{0}', space=sflag, size = 0x8, scoped, tag = 'scoped memory for tpu_custom_call.1']
    #allocation4 [shape = 's32[2]{0}', space=sflag, size = 0x8, scoped, tag = 'scoped memory for tpu_custom_call.1']
    #allocation5 [shape = 'u8[1048576]{0}', space=vmem, size = 0x100000, scoped, tag = 'input window, operand 1, single buffered']
    #allocation6 [shape = 's32[1]{0}', space=sflag, size = 0x4, scoped, tag = 'scoped memory for tpu_custom_call.1']
    #allocation7 [shape = 'u8[2048]{0}', space=vmem, size = 0x800, scoped, tag = 'input window, operand 2, single buffered']
    #allocation8 [shape = 'u8[524288]{0}', space=vmem, size = 0x80000, scoped, tag = 'output window, operand 0']
    %8 = vsyncpa [#allocation3], 0
    %s9 = scalar_lea.sflag [#allocation3], 1
    %10 = vsyncpa %s9, 0
    %11 = vsyncpa [#allocation6], 0
    %12 = vsyncpa [#allocation4], 0
    %s13 = scalar_lea.sflag [#allocation4], 1
    %14 = vsyncpa %s13, 0
    loop: start=0, step=1, limit=4
    $region2: #{tpu_custom_call.1} parent=1 // loop_pre_header
      _
    $region3: #{tpu_custom_call.1} parent=1 // loop_header
      %s16 = sphi 0, %s20
      %p17 = scmp.ge.s32.totalorder %s16, 4
      %s23 = sphi 0, %s42
      %s24 = sphi 0, %s38
      %s25 = sphi 0, %s34
      %s26 = sphi 0, %s23
      %s27 = sphi 0, %s24
      %s28 = sphi 0, %s25
      %s29 = sphi 0, %s26
      %s30 = sphi 0, %s27
      %s31 = sphi 0, %s28
      %s47 = sphi 0, %s49
      %s50 = sphi 0, %s47
      %s51 = sphi 0, %s50
      %s67 = sphi 0, %s51
      %s75 = sphi 0, %s77
      %s78 = sphi 0, %s75
      %s79 = sphi 0, %s78
      %s95 = sphi 0, %s79
      %s101 = sphi 0, %s103
      %s104 = sphi 0, %s101
      %s105 = sphi 0, %s104
      %s121 = sphi 0, %s105
      %s129 = sphi 0, %s131
      %s132 = sphi 0, %s129
      %s133 = sphi 0, %s132
      %s149 = sphi 0, %s133
    $region4: #{tpu_custom_call.1} parent=1 // loop_header_branch
      %19 = sbr.rel (%p17) target = $region8
    $region5: #{tpu_custom_call.1} parent=1 // loop_body
      %s21 = ssub.s32 %s16, 1
      %s22 = ssub.s32 %s16, 2
      %s32 = sadd.s32 1, %s25
      %p33 = scmp.ge.s32.totalorder %s32, 1
      %s34 = scalar_select %p33, 0, %s32
      %s35 = sadd.s32 1, %s24
      %s36 = scalar_select %p33, %s35, %s24
      %p37 = scmp.ge.s32.totalorder %s36, 1
      %s38 = scalar_select %p37, 0, %s36
      %s39 = sadd.s32 1, %s23
      %s40 = scalar_select %p37, %s39, %s23
      %p41 = scmp.ge.s32.totalorder %s40, 2
      %s42 = scalar_select %p41, 0, %s40
      %s43 = ssub.s32 %s23, %s42
      %s44 = ssub.s32 %s25, %s34
      %s45 = sor.u32 %s43, %s44
      %p46 = scmp.eq.s32.totalorder %s45, 0
      %s48 = sadd.s32 %s47, 1
      %s49 = scalar_select %p46, %s47, %s48
      %p52 = pneg %p46
      %p53 = scmp.eq.s32.totalorder %s16, 1
      %p54 = por %p52, %p53
      %p55 = scmp.ne.s32.totalorder %s47, %s50
      %p56 = scmp.eq.s32.totalorder %s16, 0
      %p57 = por %p55, %p56
      %p58 = scmp.ne.s32.totalorder %s47, %s50
      %p59 = scmp.eq.s32.totalorder %s21, 1
      %p60 = por %p58, %p59
      %p61 = scmp.ne.s32.totalorder %s50, %s51
      %p62 = scmp.eq.s32.totalorder %s21, 0
      %p63 = por %p61, %p62
      %p64 = scmp.ne.s32.totalorder %s50, %s51
      %p65 = scmp.eq.s32.totalorder %s22, 1
      %p66 = por %p64, %p65
      %p68 = scmp.ne.s32.totalorder %s51, %s67
      %p69 = scmp.eq.s32.totalorder %s22, 0
      %p70 = por %p68, %p69
      %s71 = ssub.s32 %s25, %s34
      %s72 = ssub.s32 %s24, %s38
      %s73 = sor.u32 %s71, %s72
      %p74 = scmp.eq.s32.totalorder %s73, 0
      %s76 = sadd.s32 %s75, 1
      %s77 = scalar_select %p74, %s75, %s76
      %p80 = pneg %p74
      %p81 = scmp.eq.s32.totalorder %s16, 1
      %p82 = por %p80, %p81
      %p83 = scmp.ne.s32.totalorder %s75, %s78
      %p84 = scmp.eq.s32.totalorder %s16, 0
      %p85 = por %p83, %p84
      %p86 = scmp.ne.s32.totalorder %s75, %s78
      %p87 = scmp.eq.s32.totalorder %s21, 1
      %p88 = por %p86, %p87
      %p89 = scmp.ne.s32.totalorder %s78, %s79
      %p90 = scmp.eq.s32.totalorder %s21, 0
      %p91 = por %p89, %p90
      %p92 = scmp.ne.s32.totalorder %s78, %s79
      %p93 = scmp.eq.s32.totalorder %s22, 1
      %p94 = por %p92, %p93
      %p96 = scmp.ne.s32.totalorder %s79, %s95
      %p97 = scmp.eq.s32.totalorder %s22, 0
      %p98 = por %p96, %p97
      %s99 = ssub.s32 %s24, %s38
      %p100 = scmp.eq.s32.totalorder %s99, 0
      %s102 = sadd.s32 %s101, 1
      %s103 = scalar_select %p100, %s101, %s102
      %p106 = pneg %p100
      %p107 = scmp.eq.s32.totalorder %s16, 1
      %p108 = por %p106, %p107
      %p109 = scmp.ne.s32.totalorder %s101, %s104
      %p110 = scmp.eq.s32.totalorder %s16, 0
      %p111 = por %p109, %p110
      %p112 = scmp.ne.s32.totalorder %s101, %s104
      %p113 = scmp.eq.s32.totalorder %s21, 1
      %p114 = por %p112, %p113
      %p115 = scmp.ne.s32.totalorder %s104, %s105
      %p116 = scmp.eq.s32.totalorder %s21, 0
      %p117 = por %p115, %p116
      %p118 = scmp.ne.s32.totalorder %s104, %s105
      %p119 = scmp.eq.s32.totalorder %s22, 1
      %p120 = por %p118, %p119
      %p122 = scmp.ne.s32.totalorder %s105, %s121
      %p123 = scmp.eq.s32.totalorder %s22, 0
      %p124 = por %p122, %p123
      %s125 = ssub.s32 %s23, %s42
      %s126 = ssub.s32 %s24, %s38
      %s127 = sor.u32 %s125, %s126
      %p128 = scmp.eq.s32.totalorder %s127, 0
      %s130 = sadd.s32 %s129, 1
      %s131 = scalar_select %p128, %s129, %s130
      %p134 = pneg %p128
      %p135 = scmp.eq.s32.totalorder %s16, 1
      %p136 = por %p134, %p135
      %p137 = scmp.ne.s32.totalorder %s129, %s132
      %p138 = scmp.eq.s32.totalorder %s16, 0
      %p139 = por %p137, %p138
      %p140 = scmp.ne.s32.totalorder %s129, %s132
      %p141 = scmp.eq.s32.totalorder %s21, 1
      %p142 = por %p140, %p141
      %p143 = scmp.ne.s32.totalorder %s132, %s133
      %p144 = scmp.eq.s32.totalorder %s21, 0
      %p145 = por %p143, %p144
      %p146 = scmp.ne.s32.totalorder %s132, %s133
      %p147 = scmp.eq.s32.totalorder %s22, 1
      %p148 = por %p146, %p147
      %p150 = scmp.ne.s32.totalorder %s133, %s149
      %p151 = scmp.eq.s32.totalorder %s22, 0
      %p152 = por %p150, %p151
      %p153 = scmp.le.s32.totalorder 1, %s16
      %p154 = scmp.lt.s32.totalorder %s16, 3
      %p155 = pnand %p153, %p154
      %p156 = pneg %p155
      // Predicated region
      $region9: #{tpu_custom_call.1} parent=5 // pred_check
        _
      $region10: #{tpu_custom_call.1} parent=5 // pred_check_branch
        %158 = sbr.rel (%p155) target = $region12
      $region11: #{tpu_custom_call.1} parent=5 // pred_region
        %s159 = ssub.s32 %s16, 1
        // Predicated region
        $region13: #{tpu_custom_call.1} parent=11 // pred_check
          %p160 = pneg %p91
        $region14: #{tpu_custom_call.1} parent=11 // pred_check_branch
          %162 = sbr.rel (%p160) target = $region16
        $region15: #{tpu_custom_call.1} parent=11 // pred_region
          %s163 = smul.u32 64, %s28
          %s164 = smul.u32 4, %s27
          %s166 = ssub.s32 32768, 32768
          %167 = vsyncadd [#allocation6], %s166
          %s168 = smul.addr %s163, 4
          %s169 = sadd.s32 %s164, %s168
          %s170 = smul.addr %s169, 128
          %s171 = scalar_lea.hbm %s1, %s170
          %s172 = sshll.u32 [#allocation5], 4
          %s173 = int_to_ptr.vmem [resolvable:$true] %s172
          %178 = dma.hbm_to_vmem [thread:$0]  %s171, 32768, %s173, [#allocation6], 512, 512, 32
        $region16: #{tpu_custom_call.1} parent=11 // pred_fallthru
          _
        // Predicated region
        $region17: #{tpu_custom_call.1} parent=11 // pred_check
          %p179 = pneg %p117
        $region18: #{tpu_custom_call.1} parent=11 // pred_check_branch
          %181 = sbr.rel (%p179) target = $region20
        $region19: #{tpu_custom_call.1} parent=11 // pred_region
          %s182 = smul.u32 4, %s27
          %s184 = ssub.s32 64, 64
          %185 = vsyncadd [#allocation6], %s184
          %s186 = smul.addr %s182, 16
          %s187 = scalar_lea.hbm %s2, %s186
          %s189 = sshll.u32 [#allocation7], 4
          %s190 = int_to_ptr.vmem [resolvable:$true] %s189
          %192 = dma.hbm_to_vmem [thread:$0]  %s187, 64, %s190, [#allocation6]
        $region20: #{tpu_custom_call.1} parent=11 // pred_fallthru
          _
      $region12: #{tpu_custom_call.1} parent=5 // pred_fallthru
        _
      %p193 = scmp.lt.s32.totalorder %s16, 2
      // Predicated region
      $region21: #{tpu_custom_call.1} parent=5 // pred_check
        %p194 = pneg %p193
      $region22: #{tpu_custom_call.1} parent=5 // pred_check_branch
        %196 = sbr.rel (%p194) target = $region24
      $region23: #{tpu_custom_call.1} parent=5 // pred_region
        // Predicated region
        $region25: #{tpu_custom_call.1} parent=23 // pred_check
          %p197 = pneg %p57
        $region26: #{tpu_custom_call.1} parent=23 // pred_check_branch
          %199 = sbr.rel (%p197) target = $region28
        $region27: #{tpu_custom_call.1} parent=23 // pred_region
          %s200 = sand.u32 %s47, 1
          %s201 = scalar_lea.sflag [#allocation3], %s200
          %s202 = sand.u32 %s47, 1
          %s203 = smul.addr %s202, 512
          %s204 = scalar_lea.vmem [#allocation2], %s203
          %s205 = smul.u32 16, %s23
          %s206 = smul.u32 4, %s25
          %s208 = ssub.s32 8192, 8192
          %209 = vsyncadd %s201, %s208
          %s210 = smul.addr %s205, 4
          %s211 = sadd.s32 %s206, %s210
          %s212 = smul.addr %s211, 128
          %s213 = scalar_lea.hbm %s0, %s212
          %s214 = sshll.u32 %s204, 4
          %s215 = int_to_ptr.vmem [resolvable:$true] %s214
          %220 = dma.hbm_to_vmem [thread:$0]  %s213, 8192, %s215, %s201, 512, 512, 32
        $region28: #{tpu_custom_call.1} parent=23 // pred_fallthru
          _
      $region24: #{tpu_custom_call.1} parent=5 // pred_fallthru
        _
      %p221 = scmp.le.s32.totalorder 1, %s16
      %p222 = scmp.lt.s32.totalorder %s16, 3
      %p223 = pnand %p221, %p222
      %p224 = pneg %p223
      // Predicated region
      $region29: #{tpu_custom_call.1} parent=5 // pred_check
        _
      $region30: #{tpu_custom_call.1} parent=5 // pred_check_branch
        %226 = sbr.rel (%p223) target = $region32
      $region31: #{tpu_custom_call.1} parent=5 // pred_region
        %s227 = ssub.s32 %s16, 1
        %s228 = sand.u32 %s50, 1
        %s229 = scalar_lea.sflag [#allocation3], %s228
        %s230 = sand.u32 %s50, 1
        %s231 = smul.addr %s230, 512
        %s232 = scalar_lea.vmem [#allocation2], %s231
        // Predicated region
        $region33: #{tpu_custom_call.1} parent=31 // pred_check
          %p233 = pneg %p63
        $region34: #{tpu_custom_call.1} parent=31 // pred_check_branch
          %235 = sbr.rel (%p233) target = $region36
        $region35: #{tpu_custom_call.1} parent=31 // pred_region
          %236 = dma.done %s229, 8192
        $region36: #{tpu_custom_call.1} parent=31 // pred_fallthru
          _
        // Predicated region
        $region37: #{tpu_custom_call.1} parent=31 // pred_check
          %p237 = pneg %p91
        $region38: #{tpu_custom_call.1} parent=31 // pred_check_branch
          %239 = sbr.rel (%p237) target = $region40
        $region39: #{tpu_custom_call.1} parent=31 // pred_region
          %240 = dma.done [#allocation6], 32768
        $region40: #{tpu_custom_call.1} parent=31 // pred_fallthru
          _
        // Predicated region
        $region41: #{tpu_custom_call.1} parent=31 // pred_check
          %p241 = pneg %p117
        $region42: #{tpu_custom_call.1} parent=31 // pred_check_branch
          %243 = sbr.rel (%p241) target = $region44
        $region43: #{tpu_custom_call.1} parent=31 // pred_region
          %244 = dma.done [#allocation6], 64
        $region44: #{tpu_custom_call.1} parent=31 // pred_fallthru
          _
        %s245 = sand.u32 %s50, 1
        %s246 = scalar_lea.sflag [#allocation3], %s245
        %s247 = sand.u32 %s50, 1
        %s248 = smul.addr %s247, 512
        %s249 = scalar_lea.vmem [#allocation2], %s248
        %p250 = pneg %p63
        %p251 = pneg %p60
        %p252 = pneg %p91
        %p253 = pneg %p88
        %p254 = pneg %p117
        %p255 = pneg %p114
        %p256 = pneg %p145
        %p257 = pneg %p142
        %s258 = sand.u32 %s132, 1
        %s259 = scalar_lea.sflag [#allocation4], %s258
        %s260 = sand.u32 %s132, 1
        %s261 = smul.addr %s260, 512
        %s262 = scalar_lea.vmem [#allocation8], %s261
        %s263 = smul.u32 16, %s26
        %s264 = smul.u32 4, %s28
        %s265 = smul.u32 64, %s28
        %s266 = smul.u32 4, %s27
        %s267 = smul.u32 4, %s27
        %s268 = smul.u32 16, %s26
        %s269 = smul.u32 4, %s27
        %p270 = scmp.eq.s32.totalorder %s28, 0
        // Predicated region
        $region45: #{tpu_custom_call.1} parent=31 // pred_check
          %p271 = pneg %p270
        $region46: #{tpu_custom_call.1} parent=31 // pred_check_branch
          %273 = sbr.rel (%p271) target = $region48
        $region47: #{tpu_custom_call.1} parent=31 // pred_region
          %v274 = vld [vmem:[#allocation7] sm:$0xf]
          %v276 = vlaneseq
          %v277 = vshrl.u32 %v276, 7
          %v278 = vsub.s32 0, %v277
          %v279 = vrot.slane %v274, %v278
          %v280 = vlaneseq
          %v281 = vshrl.u32 %v280, 7
          %v282 = vsub.s32 1, %v281
          %v283 = vrot.slane %v274, %v282
          %v284 = vlaneseq
          %v285 = vshrl.u32 %v284, 7
          %v286 = vsub.s32 2, %v285
          %v287 = vrot.slane %v274, %v286
          %v288 = vlaneseq
          %v289 = vshrl.u32 %v288, 7
          %v290 = vsub.s32 3, %v289
          %v291 = vrot.slane %v274, %v290
          %296 = vst [vmem:[%s262] sm:$0xff] %v279
          %297 = vst [vmem:[%s262 + $0x8] sm:$0xff] %v283
          %298 = vst [vmem:[%s262 + $0x10] sm:$0xff] %v287
          %299 = vst [vmem:[%s262 + $0x18] sm:$0xff] %v291
          %300 = vst [vmem:[%s262 + $0x20] sm:$0xff] %v279
          %301 = vst [vmem:[%s262 + $0x28] sm:$0xff] %v283
          %302 = vst [vmem:[%s262 + $0x30] sm:$0xff] %v287
          %303 = vst [vmem:[%s262 + $0x38] sm:$0xff] %v291
          %304 = vst [vmem:[%s262 + $0x40] sm:$0xff] %v279
          %305 = vst [vmem:[%s262 + $0x48] sm:$0xff] %v283
          %306 = vst [vmem:[%s262 + $0x50] sm:$0xff] %v287
          %307 = vst [vmem:[%s262 + $0x58] sm:$0xff] %v291
          %308 = vst [vmem:[%s262 + $0x60] sm:$0xff] %v279
          %309 = vst [vmem:[%s262 + $0x68] sm:$0xff] %v283
          %310 = vst [vmem:[%s262 + $0x70] sm:$0xff] %v287
          %311 = vst [vmem:[%s262 + $0x78] sm:$0xff] %v291
          %312 = vst [vmem:[%s262 + $0x80] sm:$0xff] %v279
          %313 = vst [vmem:[%s262 + $0x88] sm:$0xff] %v283
          %314 = vst [vmem:[%s262 + $0x90] sm:$0xff] %v287
          %315 = vst [vmem:[%s262 + $0x98] sm:$0xff] %v291
          %316 = vst [vmem:[%s262 + $0xa0] sm:$0xff] %v279
          %317 = vst [vmem:[%s262 + $0xa8] sm:$0xff] %v283
          %318 = vst [vmem:[%s262 + $0xb0] sm:$0xff] %v287
          %319 = vst [vmem:[%s262 + $0xb8] sm:$0xff] %v291
          %320 = vst [vmem:[%s262 + $0xc0] sm:$0xff] %v279
          %321 = vst [vmem:[%s262 + $0xc8] sm:$0xff] %v283
          %322 = vst [vmem:[%s262 + $0xd0] sm:$0xff] %v287
          %323 = vst [vmem:[%s262 + $0xd8] sm:$0xff] %v291
          %324 = vst [vmem:[%s262 + $0xe0] sm:$0xff] %v279
          %325 = vst [vmem:[%s262 + $0xe8] sm:$0xff] %v283
          %326 = vst [vmem:[%s262 + $0xf0] sm:$0xff] %v287
          %327 = vst [vmem:[%s262 + $0xf8] sm:$0xff] %v291
          %328 = vst [vmem:[%s262 + $0x100] sm:$0xff] %v279
          %329 = vst [vmem:[%s262 + $0x108] sm:$0xff] %v283
          %330 = vst [vmem:[%s262 + $0x110] sm:$0xff] %v287
          %331 = vst [vmem:[%s262 + $0x118] sm:$0xff] %v291
          %332 = vst [vmem:[%s262 + $0x120] sm:$0xff] %v279
          %333 = vst [vmem:[%s262 + $0x128] sm:$0xff] %v283
          %334 = vst [vmem:[%s262 + $0x130] sm:$0xff] %v287
          %335 = vst [vmem:[%s262 + $0x138] sm:$0xff] %v291
          %336 = vst [vmem:[%s262 + $0x140] sm:$0xff] %v279
          %337 = vst [vmem:[%s262 + $0x148] sm:$0xff] %v283
          %338 = vst [vmem:[%s262 + $0x150] sm:$0xff] %v287
          %339 = vst [vmem:[%s262 + $0x158] sm:$0xff] %v291
          %340 = vst [vmem:[%s262 + $0x160] sm:$0xff] %v279
          %341 = vst [vmem:[%s262 + $0x168] sm:$0xff] %v283
          %342 = vst [vmem:[%s262 + $0x170] sm:$0xff] %v287
          %343 = vst [vmem:[%s262 + $0x178] sm:$0xff] %v291
          %344 = vst [vmem:[%s262 + $0x180] sm:$0xff] %v279
          %345 = vst [vmem:[%s262 + $0x188] sm:$0xff] %v283
          %346 = vst [vmem:[%s262 + $0x190] sm:$0xff] %v287
          %347 = vst [vmem:[%s262 + $0x198] sm:$0xff] %v291
          %348 = vst [vmem:[%s262 + $0x1a0] sm:$0xff] %v279
          %349 = vst [vmem:[%s262 + $0x1a8] sm:$0xff] %v283
          %350 = vst [vmem:[%s262 + $0x1b0] sm:$0xff] %v287
          %351 = vst [vmem:[%s262 + $0x1b8] sm:$0xff] %v291
          %352 = vst [vmem:[%s262 + $0x1c0] sm:$0xff] %v279
          %353 = vst [vmem:[%s262 + $0x1c8] sm:$0xff] %v283
          %354 = vst [vmem:[%s262 + $0x1d0] sm:$0xff] %v287
          %355 = vst [vmem:[%s262 + $0x1d8] sm:$0xff] %v291
          %356 = vst [vmem:[%s262 + $0x1e0] sm:$0xff] %v279
          %357 = vst [vmem:[%s262 + $0x1e8] sm:$0xff] %v283
          %358 = vst [vmem:[%s262 + $0x1f0] sm:$0xff] %v287
          %359 = vst [vmem:[%s262 + $0x1f8] sm:$0xff] %v291
        $region48: #{tpu_custom_call.1} parent=31 // pred_fallthru
          _
        %p360 = scmp.eq.s32.totalorder %s28, %s27
        // Predicated region
        $region49: #{tpu_custom_call.1} parent=31 // pred_check
          %p361 = pneg %p360
        $region50: #{tpu_custom_call.1} parent=31 // pred_check_branch
          %363 = sbr.rel (%p361) target = $region52
        $region51: #{tpu_custom_call.1} parent=31 // pred_region
          %v364 = vld [vmem:[%s262] sm:$0xff]
          %v365 = vld [vmem:[%s262 + $0x8] sm:$0xff]
          %v366 = vld [vmem:[%s262 + $0x10] sm:$0xff]
          %v367 = vld [vmem:[%s262 + $0x18] sm:$0xff]
          %v368 = vld [vmem:[%s262 + $0x20] sm:$0xff]
          %v369 = vld [vmem:[%s262 + $0x28] sm:$0xff]
          %v370 = vld [vmem:[%s262 + $0x30] sm:$0xff]
          %v371 = vld [vmem:[%s262 + $0x38] sm:$0xff]
          %v372 = vld [vmem:[%s262 + $0x40] sm:$0xff]
          %v373 = vld [vmem:[%s262 + $0x48] sm:$0xff]
          %v374 = vld [vmem:[%s262 + $0x50] sm:$0xff]
          %v375 = vld [vmem:[%s262 + $0x58] sm:$0xff]
          %v376 = vld [vmem:[%s262 + $0x60] sm:$0xff]
          %v377 = vld [vmem:[%s262 + $0x68] sm:$0xff]
          %v378 = vld [vmem:[%s262 + $0x70] sm:$0xff]
          %v379 = vld [vmem:[%s262 + $0x78] sm:$0xff]
          %v380 = vld [vmem:[%s262 + $0x80] sm:$0xff]
          %v381 = vld [vmem:[%s262 + $0x88] sm:$0xff]
          %v382 = vld [vmem:[%s262 + $0x90] sm:$0xff]
          %v383 = vld [vmem:[%s262 + $0x98] sm:$0xff]
          %v384 = vld [vmem:[%s262 + $0xa0] sm:$0xff]
          %v385 = vld [vmem:[%s262 + $0xa8] sm:$0xff]
          %v386 = vld [vmem:[%s262 + $0xb0] sm:$0xff]
          %v387 = vld [vmem:[%s262 + $0xb8] sm:$0xff]
          %v388 = vld [vmem:[%s262 + $0xc0] sm:$0xff]
          %v389 = vld [vmem:[%s262 + $0xc8] sm:$0xff]
          %v390 = vld [vmem:[%s262 + $0xd0] sm:$0xff]
          %v391 = vld [vmem:[%s262 + $0xd8] sm:$0xff]
          %v392 = vld [vmem:[%s262 + $0xe0] sm:$0xff]
          %v393 = vld [vmem:[%s262 + $0xe8] sm:$0xff]
          %v394 = vld [vmem:[%s262 + $0xf0] sm:$0xff]
          %v395 = vld [vmem:[%s262 + $0xf8] sm:$0xff]
          %v396 = vld [vmem:[%s262 + $0x100] sm:$0xff]
          %v397 = vld [vmem:[%s262 + $0x108] sm:$0xff]
          %v398 = vld [vmem:[%s262 + $0x110] sm:$0xff]
          %v399 = vld [vmem:[%s262 + $0x118] sm:$0xff]
          %v400 = vld [vmem:[%s262 + $0x120] sm:$0xff]
          %v401 = vld [vmem:[%s262 + $0x128] sm:$0xff]
          %v402 = vld [vmem:[%s262 + $0x130] sm:$0xff]
          %v403 = vld [vmem:[%s262 + $0x138] sm:$0xff]
          %v404 = vld [vmem:[%s262 + $0x140] sm:$0xff]
          %v405 = vld [vmem:[%s262 + $0x148] sm:$0xff]
          %v406 = vld [vmem:[%s262 + $0x150] sm:$0xff]
          %v407 = vld [vmem:[%s262 + $0x158] sm:$0xff]
          %v408 = vld [vmem:[%s262 + $0x160] sm:$0xff]
          %v409 = vld [vmem:[%s262 + $0x168] sm:$0xff]
          %v410 = vld [vmem:[%s262 + $0x170] sm:$0xff]
          %v411 = vld [vmem:[%s262 + $0x178] sm:$0xff]
          %v412 = vld [vmem:[%s262 + $0x180] sm:$0xff]
          %v413 = vld [vmem:[%s262 + $0x188] sm:$0xff]
          %v414 = vld [vmem:[%s262 + $0x190] sm:$0xff]
          %v415 = vld [vmem:[%s262 + $0x198] sm:$0xff]
          %v416 = vld [vmem:[%s262 + $0x1a0] sm:$0xff]
          %v417 = vld [vmem:[%s262 + $0x1a8] sm:$0xff]
          %v418 = vld [vmem:[%s262 + $0x1b0] sm:$0xff]
          %v419 = vld [vmem:[%s262 + $0x1b8] sm:$0xff]
          %v420 = vld [vmem:[%s262 + $0x1c0] sm:$0xff]
          %v421 = vld [vmem:[%s262 + $0x1c8] sm:$0xff]
          %v422 = vld [vmem:[%s262 + $0x1d0] sm:$0xff]
          %v423 = vld [vmem:[%s262 + $0x1d8] sm:$0xff]
          %v424 = vld [vmem:[%s262 + $0x1e0] sm:$0xff]
          %v425 = vld [vmem:[%s262 + $0x1e8] sm:$0xff]
          %v426 = vld [vmem:[%s262 + $0x1f0] sm:$0xff]
          %v427 = vld [vmem:[%s262 + $0x1f8] sm:$0xff]
          %v428 = vld [vmem:[%s232] sm:$0xff]
          %v429 = vld [vmem:[%s232 + $0x8] sm:$0xff]
          %v430 = vld [vmem:[%s232 + $0x10] sm:$0xff]
          %v431 = vld [vmem:[%s232 + $0x18] sm:$0xff]
          %v432 = vld [vmem:[%s232 + $0x20] sm:$0xff]
          %v433 = vld [vmem:[%s232 + $0x28] sm:$0xff]
          %v434 = vld [vmem:[%s232 + $0x30] sm:$0xff]
          %v435 = vld [vmem:[%s232 + $0x38] sm:$0xff]
          %v436 = vld [vmem:[%s232 + $0x40] sm:$0xff]
          %v437 = vld [vmem:[%s232 + $0x48] sm:$0xff]
          %v438 = vld [vmem:[%s232 + $0x50] sm:$0xff]
          %v439 = vld [vmem:[%s232 + $0x58] sm:$0xff]
          %v440 = vld [vmem:[%s232 + $0x60] sm:$0xff]
          %v441 = vld [vmem:[%s232 + $0x68] sm:$0xff]
          %v442 = vld [vmem:[%s232 + $0x70] sm:$0xff]
          %v443 = vld [vmem:[%s232 + $0x78] sm:$0xff]
          %v444 = vld [vmem:[%s232 + $0x80] sm:$0xff]
          %v445 = vld [vmem:[%s232 + $0x88] sm:$0xff]
          %v446 = vld [vmem:[%s232 + $0x90] sm:$0xff]
          %v447 = vld [vmem:[%s232 + $0x98] sm:$0xff]
          %v448 = vld [vmem:[%s232 + $0xa0] sm:$0xff]
          %v449 = vld [vmem:[%s232 + $0xa8] sm:$0xff]
          %v450 = vld [vmem:[%s232 + $0xb0] sm:$0xff]
          %v451 = vld [vmem:[%s232 + $0xb8] sm:$0xff]
          %v452 = vld [vmem:[%s232 + $0xc0] sm:$0xff]
          %v453 = vld [vmem:[%s232 + $0xc8] sm:$0xff]
          %v454 = vld [vmem:[%s232 + $0xd0] sm:$0xff]
          %v455 = vld [vmem:[%s232 + $0xd8] sm:$0xff]
          %v456 = vld [vmem:[%s232 + $0xe0] sm:$0xff]
          %v457 = vld [vmem:[%s232 + $0xe8] sm:$0xff]
          %v458 = vld [vmem:[%s232 + $0xf0] sm:$0xff]
          %v459 = vld [vmem:[%s232 + $0xf8] sm:$0xff]
          %v460 = vld [vmem:[%s232 + $0x100] sm:$0xff]
          %v461 = vld [vmem:[%s232 + $0x108] sm:$0xff]
          %v462 = vld [vmem:[%s232 + $0x110] sm:$0xff]
          %v463 = vld [vmem:[%s232 + $0x118] sm:$0xff]
          %v464 = vld [vmem:[%s232 + $0x120] sm:$0xff]
          %v465 = vld [vmem:[%s232 + $0x128] sm:$0xff]
          %v466 = vld [vmem:[%s232 + $0x130] sm:$0xff]
          %v467 = vld [vmem:[%s232 + $0x138] sm:$0xff]
          %v468 = vld [vmem:[%s232 + $0x140] sm:$0xff]
          %v469 = vld [vmem:[%s232 + $0x148] sm:$0xff]
          %v470 = vld [vmem:[%s232 + $0x150] sm:$0xff]
          %v471 = vld [vmem:[%s232 + $0x158] sm:$0xff]
          %v472 = vld [vmem:[%s232 + $0x160] sm:$0xff]
          %v473 = vld [vmem:[%s232 + $0x168] sm:$0xff]
          %v474 = vld [vmem:[%s232 + $0x170] sm:$0xff]
          %v475 = vld [vmem:[%s232 + $0x178] sm:$0xff]
          %v476 = vld [vmem:[%s232 + $0x180] sm:$0xff]
          %v477 = vld [vmem:[%s232 + $0x188] sm:$0xff]
          %v478 = vld [vmem:[%s232 + $0x190] sm:$0xff]
          %v479 = vld [vmem:[%s232 + $0x198] sm:$0xff]
          %v480 = vld [vmem:[%s232 + $0x1a0] sm:$0xff]
          %v481 = vld [vmem:[%s232 + $0x1a8] sm:$0xff]
          %v482 = vld [vmem:[%s232 + $0x1b0] sm:$0xff]
          %v483 = vld [vmem:[%s232 + $0x1b8] sm:$0xff]
          %v484 = vld [vmem:[%s232 + $0x1c0] sm:$0xff]
          %v485 = vld [vmem:[%s232 + $0x1c8] sm:$0xff]
          %v486 = vld [vmem:[%s232 + $0x1d0] sm:$0xff]
          %v487 = vld [vmem:[%s232 + $0x1d8] sm:$0xff]
          %v488 = vld [vmem:[%s232 + $0x1e0] sm:$0xff]
          %v489 = vld [vmem:[%s232 + $0x1e8] sm:$0xff]
          %v490 = vld [vmem:[%s232 + $0x1f0] sm:$0xff]
          %v491 = vld [vmem:[%s232 + $0x1f8] sm:$0xff]
          %v492 = vadd.f32 %v364, %v428
          %v493 = vadd.f32 %v365, %v429
          %v494 = vadd.f32 %v366, %v430
          %v495 = vadd.f32 %v367, %v431
          %v496 = vadd.f32 %v368, %v432
          %v497 = vadd.f32 %v369, %v433
          %v498 = vadd.f32 %v370, %v434
          %v499 = vadd.f32 %v371, %v435
          %v500 = vadd.f32 %v372, %v436
          %v501 = vadd.f32 %v373, %v437
          %v502 = vadd.f32 %v374, %v438
          %v503 = vadd.f32 %v375, %v439
          %v504 = vadd.f32 %v376, %v440
          %v505 = vadd.f32 %v377, %v441
          %v506 = vadd.f32 %v378, %v442
          %v507 = vadd.f32 %v379, %v443
          %v508 = vadd.f32 %v380, %v444
          %v509 = vadd.f32 %v381, %v445
          %v510 = vadd.f32 %v382, %v446
          %v511 = vadd.f32 %v383, %v447
          %v512 = vadd.f32 %v384, %v448
          %v513 = vadd.f32 %v385, %v449
          %v514 = vadd.f32 %v386, %v450
          %v515 = vadd.f32 %v387, %v451
          %v516 = vadd.f32 %v388, %v452
          %v517 = vadd.f32 %v389, %v453
          %v518 = vadd.f32 %v390, %v454
          %v519 = vadd.f32 %v391, %v455
          %v520 = vadd.f32 %v392, %v456
          %v521 = vadd.f32 %v393, %v457
          %v522 = vadd.f32 %v394, %v458
          %v523 = vadd.f32 %v395, %v459
          %v524 = vadd.f32 %v396, %v460
          %v525 = vadd.f32 %v397, %v461
          %v526 = vadd.f32 %v398, %v462
          %v527 = vadd.f32 %v399, %v463
          %v528 = vadd.f32 %v400, %v464
          %v529 = vadd.f32 %v401, %v465
          %v530 = vadd.f32 %v402, %v466
          %v531 = vadd.f32 %v403, %v467
          %v532 = vadd.f32 %v404, %v468
          %v533 = vadd.f32 %v405, %v469
          %v534 = vadd.f32 %v406, %v470
          %v535 = vadd.f32 %v407, %v471
          %v536 = vadd.f32 %v408, %v472
          %v537 = vadd.f32 %v409, %v473
          %v538 = vadd.f32 %v410, %v474
          %v539 = vadd.f32 %v411, %v475
          %v540 = vadd.f32 %v412, %v476
          %v541 = vadd.f32 %v413, %v477
          %v542 = vadd.f32 %v414, %v478
          %v543 = vadd.f32 %v415, %v479
          %v544 = vadd.f32 %v416, %v480
          %v545 = vadd.f32 %v417, %v481
          %v546 = vadd.f32 %v418, %v482
          %v547 = vadd.f32 %v419, %v483
          %v548 = vadd.f32 %v420, %v484
          %v549 = vadd.f32 %v421, %v485
          %v550 = vadd.f32 %v422, %v486
          %v551 = vadd.f32 %v423, %v487
          %v552 = vadd.f32 %v424, %v488
          %v553 = vadd.f32 %v425, %v489
          %v554 = vadd.f32 %v426, %v490
          %v555 = vadd.f32 %v427, %v491
          %556 = vst [vmem:[%s262] sm:$0xff] %v492
          %557 = vst [vmem:[%s262 + $0x8] sm:$0xff] %v493
          %558 = vst [vmem:[%s262 + $0x10] sm:$0xff] %v494
          %559 = vst [vmem:[%s262 + $0x18] sm:$0xff] %v495
          %560 = vst [vmem:[%s262 + $0x20] sm:$0xff] %v496
          %561 = vst [vmem:[%s262 + $0x28] sm:$0xff] %v497
          %562 = vst [vmem:[%s262 + $0x30] sm:$0xff] %v498
          %563 = vst [vmem:[%s262 + $0x38] sm:$0xff] %v499
          %564 = vst [vmem:[%s262 + $0x40] sm:$0xff] %v500
          %565 = vst [vmem:[%s262 + $0x48] sm:$0xff] %v501
          %566 = vst [vmem:[%s262 + $0x50] sm:$0xff] %v502
          %567 = vst [vmem:[%s262 + $0x58] sm:$0xff] %v503
          %568 = vst [vmem:[%s262 + $0x60] sm:$0xff] %v504
          %569 = vst [vmem:[%s262 + $0x68] sm:$0xff] %v505
          %570 = vst [vmem:[%s262 + $0x70] sm:$0xff] %v506
          %571 = vst [vmem:[%s262 + $0x78] sm:$0xff] %v507
          %572 = vst [vmem:[%s262 + $0x80] sm:$0xff] %v508
          %573 = vst [vmem:[%s262 + $0x88] sm:$0xff] %v509
          %574 = vst [vmem:[%s262 + $0x90] sm:$0xff] %v510
          %575 = vst [vmem:[%s262 + $0x98] sm:$0xff] %v511
          %576 = vst [vmem:[%s262 + $0xa0] sm:$0xff] %v512
          %577 = vst [vmem:[%s262 + $0xa8] sm:$0xff] %v513
          %578 = vst [vmem:[%s262 + $0xb0] sm:$0xff] %v514
          %579 = vst [vmem:[%s262 + $0xb8] sm:$0xff] %v515
          %580 = vst [vmem:[%s262 + $0xc0] sm:$0xff] %v516
          %581 = vst [vmem:[%s262 + $0xc8] sm:$0xff] %v517
          %582 = vst [vmem:[%s262 + $0xd0] sm:$0xff] %v518
          %583 = vst [vmem:[%s262 + $0xd8] sm:$0xff] %v519
          %584 = vst [vmem:[%s262 + $0xe0] sm:$0xff] %v520
          %585 = vst [vmem:[%s262 + $0xe8] sm:$0xff] %v521
          %586 = vst [vmem:[%s262 + $0xf0] sm:$0xff] %v522
          %587 = vst [vmem:[%s262 + $0xf8] sm:$0xff] %v523
          %588 = vst [vmem:[%s262 + $0x100] sm:$0xff] %v524
          %589 = vst [vmem:[%s262 + $0x108] sm:$0xff] %v525
          %590 = vst [vmem:[%s262 + $0x110] sm:$0xff] %v526
          %591 = vst [vmem:[%s262 + $0x118] sm:$0xff] %v527
          %592 = vst [vmem:[%s262 + $0x120] sm:$0xff] %v528
          %593 = vst [vmem:[%s262 + $0x128] sm:$0xff] %v529
          %594 = vst [vmem:[%s262 + $0x130] sm:$0xff] %v530
          %595 = vst [vmem:[%s262 + $0x138] sm:$0xff] %v531
          %596 = vst [vmem:[%s262 + $0x140] sm:$0xff] %v532
          %597 = vst [vmem:[%s262 + $0x148] sm:$0xff] %v533
          %598 = vst [vmem:[%s262 + $0x150] sm:$0xff] %v534
          %599 = vst [vmem:[%s262 + $0x158] sm:$0xff] %v535
          %600 = vst [vmem:[%s262 + $0x160] sm:$0xff] %v536
          %601 = vst [vmem:[%s262 + $0x168] sm:$0xff] %v537
          %602 = vst [vmem:[%s262 + $0x170] sm:$0xff] %v538
          %603 = vst [vmem:[%s262 + $0x178] sm:$0xff] %v539
          %604 = vst [vmem:[%s262 + $0x180] sm:$0xff] %v540
          %605 = vst [vmem:[%s262 + $0x188] sm:$0xff] %v541
          %606 = vst [vmem:[%s262 + $0x190] sm:$0xff] %v542
          %607 = vst [vmem:[%s262 + $0x198] sm:$0xff] %v543
          %608 = vst [vmem:[%s262 + $0x1a0] sm:$0xff] %v544
          %609 = vst [vmem:[%s262 + $0x1a8] sm:$0xff] %v545
          %610 = vst [vmem:[%s262 + $0x1b0] sm:$0xff] %v546
          %611 = vst [vmem:[%s262 + $0x1b8] sm:$0xff] %v547
          %612 = vst [vmem:[%s262 + $0x1c0] sm:$0xff] %v548
          %613 = vst [vmem:[%s262 + $0x1c8] sm:$0xff] %v549
          %614 = vst [vmem:[%s262 + $0x1d0] sm:$0xff] %v550
          %615 = vst [vmem:[%s262 + $0x1d8] sm:$0xff] %v551
          %616 = vst [vmem:[%s262 + $0x1e0] sm:$0xff] %v552
          %617 = vst [vmem:[%s262 + $0x1e8] sm:$0xff] %v553
          %618 = vst [vmem:[%s262 + $0x1f0] sm:$0xff] %v554
          %619 = vst [vmem:[%s262 + $0x1f8] sm:$0xff] %v555
        $region52: #{tpu_custom_call.1} parent=31 // pred_fallthru
          _
        %v620 = vld [vmem:[%s262] sm:$0xff]
        %v621 = vld [vmem:[%s262 + $0x8] sm:$0xff]
        %v622 = vld [vmem:[%s262 + $0x10] sm:$0xff]
        %v623 = vld [vmem:[%s262 + $0x18] sm:$0xff]
        %v624 = vld [vmem:[%s262 + $0x20] sm:$0xff]
        %v625 = vld [vmem:[%s262 + $0x28] sm:$0xff]
        %v626 = vld [vmem:[%s262 + $0x30] sm:$0xff]
        %v627 = vld [vmem:[%s262 + $0x38] sm:$0xff]
        %v628 = vld [vmem:[%s262 + $0x40] sm:$0xff]
        %v629 = vld [vmem:[%s262 + $0x48] sm:$0xff]
        %v630 = vld [vmem:[%s262 + $0x50] sm:$0xff]
        %v631 = vld [vmem:[%s262 + $0x58] sm:$0xff]
        %v632 = vld [vmem:[%s262 + $0x60] sm:$0xff]
        %v633 = vld [vmem:[%s262 + $0x68] sm:$0xff]
        %v634 = vld [vmem:[%s262 + $0x70] sm:$0xff]
        %v635 = vld [vmem:[%s262 + $0x78] sm:$0xff]
        %v636 = vld [vmem:[%s262 + $0x80] sm:$0xff]
        %v637 = vld [vmem:[%s262 + $0x88] sm:$0xff]
        %v638 = vld [vmem:[%s262 + $0x90] sm:$0xff]
        %v639 = vld [vmem:[%s262 + $0x98] sm:$0xff]
        %v640 = vld [vmem:[%s262 + $0xa0] sm:$0xff]
        %v641 = vld [vmem:[%s262 + $0xa8] sm:$0xff]
        %v642 = vld [vmem:[%s262 + $0xb0] sm:$0xff]
        %v643 = vld [vmem:[%s262 + $0xb8] sm:$0xff]
        %v644 = vld [vmem:[%s262 + $0xc0] sm:$0xff]
        %v645 = vld [vmem:[%s262 + $0xc8] sm:$0xff]
        %v646 = vld [vmem:[%s262 + $0xd0] sm:$0xff]
        %v647 = vld [vmem:[%s262 + $0xd8] sm:$0xff]
        %v648 = vld [vmem:[%s262 + $0xe0] sm:$0xff]
        %v649 = vld [vmem:[%s262 + $0xe8] sm:$0xff]
        %v650 = vld [vmem:[%s262 + $0xf0] sm:$0xff]
        %v651 = vld [vmem:[%s262 + $0xf8] sm:$0xff]
        %v652 = vld [vmem:[%s262 + $0x100] sm:$0xff]
        %v653 = vld [vmem:[%s262 + $0x108] sm:$0xff]
        %v654 = vld [vmem:[%s262 + $0x110] sm:$0xff]
        %v655 = vld [vmem:[%s262 + $0x118] sm:$0xff]
        %v656 = vld [vmem:[%s262 + $0x120] sm:$0xff]
        %v657 = vld [vmem:[%s262 + $0x128] sm:$0xff]
        %v658 = vld [vmem:[%s262 + $0x130] sm:$0xff]
        %v659 = vld [vmem:[%s262 + $0x138] sm:$0xff]
        %v660 = vld [vmem:[%s262 + $0x140] sm:$0xff]
        %v661 = vld [vmem:[%s262 + $0x148] sm:$0xff]
        %v662 = vld [vmem:[%s262 + $0x150] sm:$0xff]
        %v663 = vld [vmem:[%s262 + $0x158] sm:$0xff]
        %v664 = vld [vmem:[%s262 + $0x160] sm:$0xff]
        %v665 = vld [vmem:[%s262 + $0x168] sm:$0xff]
        %v666 = vld [vmem:[%s262 + $0x170] sm:$0xff]
        %v667 = vld [vmem:[%s262 + $0x178] sm:$0xff]
        %v668 = vld [vmem:[%s262 + $0x180] sm:$0xff]
        %v669 = vld [vmem:[%s262 + $0x188] sm:$0xff]
        %v670 = vld [vmem:[%s262 + $0x190] sm:$0xff]
        %v671 = vld [vmem:[%s262 + $0x198] sm:$0xff]
        %v672 = vld [vmem:[%s262 + $0x1a0] sm:$0xff]
        %v673 = vld [vmem:[%s262 + $0x1a8] sm:$0xff]
        %v674 = vld [vmem:[%s262 + $0x1b0] sm:$0xff]
        %v675 = vld [vmem:[%s262 + $0x1b8] sm:$0xff]
        %v676 = vld [vmem:[%s262 + $0x1c0] sm:$0xff]
        %v677 = vld [vmem:[%s262 + $0x1c8] sm:$0xff]
        %v678 = vld [vmem:[%s262 + $0x1d0] sm:$0xff]
        %v679 = vld [vmem:[%s262 + $0x1d8] sm:$0xff]
        %v680 = vld [vmem:[%s262 + $0x1e0] sm:$0xff]
        %v681 = vld [vmem:[%s262 + $0x1e8] sm:$0xff]
        %v682 = vld [vmem:[%s262 + $0x1f0] sm:$0xff]
        %v683 = vld [vmem:[%s262 + $0x1f8] sm:$0xff]
        %v684 = vld [vmem:[%s232] sm:$0xff]
        %v685 = vld [vmem:[%s232 + $0x8] sm:$0xff]
        %v686 = vld [vmem:[%s232 + $0x10] sm:$0xff]
        %v687 = vld [vmem:[%s232 + $0x18] sm:$0xff]
        %v688 = vld [vmem:[%s232 + $0x20] sm:$0xff]
        %v689 = vld [vmem:[%s232 + $0x28] sm:$0xff]
        %v690 = vld [vmem:[%s232 + $0x30] sm:$0xff]
        %v691 = vld [vmem:[%s232 + $0x38] sm:$0xff]
        %v692 = vld [vmem:[%s232 + $0x40] sm:$0xff]
        %v693 = vld [vmem:[%s232 + $0x48] sm:$0xff]
        %v694 = vld [vmem:[%s232 + $0x50] sm:$0xff]
        %v695 = vld [vmem:[%s232 + $0x58] sm:$0xff]
        %v696 = vld [vmem:[%s232 + $0x60] sm:$0xff]
        %v697 = vld [vmem:[%s232 + $0x68] sm:$0xff]
        %v698 = vld [vmem:[%s232 + $0x70] sm:$0xff]
        %v699 = vld [vmem:[%s232 + $0x78] sm:$0xff]
        %v700 = vld [vmem:[%s232 + $0x80] sm:$0xff]
        %v701 = vld [vmem:[%s232 + $0x88] sm:$0xff]
        %v702 = vld [vmem:[%s232 + $0x90] sm:$0xff]
        %v703 = vld [vmem:[%s232 + $0x98] sm:$0xff]
        %v704 = vld [vmem:[%s232 + $0xa0] sm:$0xff]
        %v705 = vld [vmem:[%s232 + $0xa8] sm:$0xff]
        %v706 = vld [vmem:[%s232 + $0xb0] sm:$0xff]
        %v707 = vld [vmem:[%s232 + $0xb8] sm:$0xff]
        %v708 = vld [vmem:[%s232 + $0xc0] sm:$0xff]
        %v709 = vld [vmem:[%s232 + $0xc8] sm:$0xff]
        %v710 = vld [vmem:[%s232 + $0xd0] sm:$0xff]
        %v711 = vld [vmem:[%s232 + $0xd8] sm:$0xff]
        %v712 = vld [vmem:[%s232 + $0xe0] sm:$0xff]
        %v713 = vld [vmem:[%s232 + $0xe8] sm:$0xff]
        %v714 = vld [vmem:[%s232 + $0xf0] sm:$0xff]
        %v715 = vld [vmem:[%s232 + $0xf8] sm:$0xff]
        %v716 = vld [vmem:[%s232 + $0x100] sm:$0xff]
        %v717 = vld [vmem:[%s232 + $0x108] sm:$0xff]
        %v718 = vld [vmem:[%s232 + $0x110] sm:$0xff]
        %v719 = vld [vmem:[%s232 + $0x118] sm:$0xff]
        %v720 = vld [vmem:[%s232 + $0x120] sm:$0xff]
        %v721 = vld [vmem:[%s232 + $0x128] sm:$0xff]
        %v722 = vld [vmem:[%s232 + $0x130] sm:$0xff]
        %v723 = vld [vmem:[%s232 + $0x138] sm:$0xff]
        %v724 = vld [vmem:[%s232 + $0x140] sm:$0xff]
        %v725 = vld [vmem:[%s232 + $0x148] sm:$0xff]
        %v726 = vld [vmem:[%s232 + $0x150] sm:$0xff]
        %v727 = vld [vmem:[%s232 + $0x158] sm:$0xff]
        %v728 = vld [vmem:[%s232 + $0x160] sm:$0xff]
        %v729 = vld [vmem:[%s232 + $0x168] sm:$0xff]
        %v730 = vld [vmem:[%s232 + $0x170] sm:$0xff]
        %v731 = vld [vmem:[%s232 + $0x178] sm:$0xff]
        %v732 = vld [vmem:[%s232 + $0x180] sm:$0xff]
        %v733 = vld [vmem:[%s232 + $0x188] sm:$0xff]
        %v734 = vld [vmem:[%s232 + $0x190] sm:$0xff]
        %v735 = vld [vmem:[%s232 + $0x198] sm:$0xff]
        %v736 = vld [vmem:[%s232 + $0x1a0] sm:$0xff]
        %v737 = vld [vmem:[%s232 + $0x1a8] sm:$0xff]
        %v738 = vld [vmem:[%s232 + $0x1b0] sm:$0xff]
        %v739 = vld [vmem:[%s232 + $0x1b8] sm:$0xff]
        %v740 = vld [vmem:[%s232 + $0x1c0] sm:$0xff]
        %v741 = vld [vmem:[%s232 + $0x1c8] sm:$0xff]
        %v742 = vld [vmem:[%s232 + $0x1d0] sm:$0xff]
        %v743 = vld [vmem:[%s232 + $0x1d8] sm:$0xff]
        %v744 = vld [vmem:[%s232 + $0x1e0] sm:$0xff]
        %v745 = vld [vmem:[%s232 + $0x1e8] sm:$0xff]
        %v746 = vld [vmem:[%s232 + $0x1f0] sm:$0xff]
        %v747 = vld [vmem:[%s232 + $0x1f8] sm:$0xff]
        %v748 = vld [vmem:[#allocation5] sm:$0xff]
        %v749 = vld [vmem:[#allocation5 + $0x8] sm:$0xff]
        %v750 = vld [vmem:[#allocation5 + $0x10] sm:$0xff]
        %v751 = vld [vmem:[#allocation5 + $0x18] sm:$0xff]
        %v752 = vld [vmem:[#allocation5 + $0x20] sm:$0xff]
        %v753 = vld [vmem:[#allocation5 + $0x28] sm:$0xff]
        %v754 = vld [vmem:[#allocation5 + $0x30] sm:$0xff]
        %v755 = vld [vmem:[#allocation5 + $0x38] sm:$0xff]
        %v756 = vld [vmem:[#allocation5 + $0x40] sm:$0xff]
        %v757 = vld [vmem:[#allocation5 + $0x48] sm:$0xff]
        %v758 = vld [vmem:[#allocation5 + $0x50] sm:$0xff]
        %v759 = vld [vmem:[#allocation5 + $0x58] sm:$0xff]
        %v760 = vld [vmem:[#allocation5 + $0x60] sm:$0xff]
        %v761 = vld [vmem:[#allocation5 + $0x68] sm:$0xff]
        %v762 = vld [vmem:[#allocation5 + $0x70] sm:$0xff]
        %v763 = vld [vmem:[#allocation5 + $0x78] sm:$0xff]
        %v764 = vld [vmem:[#allocation5 + $0x80] sm:$0xff]
        %v765 = vld [vmem:[#allocation5 + $0x88] sm:$0xff]
        %v766 = vld [vmem:[#allocation5 + $0x90] sm:$0xff]
        %v767 = vld [vmem:[#allocation5 + $0x98] sm:$0xff]
        %v768 = vld [vmem:[#allocation5 + $0xa0] sm:$0xff]
        %v769 = vld [vmem:[#allocation5 + $0xa8] sm:$0xff]
        %v770 = vld [vmem:[#allocation5 + $0xb0] sm:$0xff]
        %v771 = vld [vmem:[#allocation5 + $0xb8] sm:$0xff]
        %v772 = vld [vmem:[#allocation5 + $0xc0] sm:$0xff]
        %v773 = vld [vmem:[#allocation5 + $0xc8] sm:$0xff]
        %v774 = vld [vmem:[#allocation5 + $0xd0] sm:$0xff]
        %v775 = vld [vmem:[#allocation5 + $0xd8] sm:$0xff]
        %v776 = vld [vmem:[#allocation5 + $0xe0] sm:$0xff]
        %v777 = vld [vmem:[#allocation5 + $0xe8] sm:$0xff]
        %v778 = vld [vmem:[#allocation5 + $0xf0] sm:$0xff]
        %v779 = vld [vmem:[#allocation5 + $0xf8] sm:$0xff]
        %v780 = vld [vmem:[#allocation5 + $0x100] sm:$0xff]
        %v781 = vld [vmem:[#allocation5 + $0x108] sm:$0xff]
        %v782 = vld [vmem:[#allocation5 + $0x110] sm:$0xff]
        %v783 = vld [vmem:[#allocation5 + $0x118] sm:$0xff]
        %v784 = vld [vmem:[#allocation5 + $0x120] sm:$0xff]
        %v785 = vld [vmem:[#allocation5 + $0x128] sm:$0xff]
        %v786 = vld [vmem:[#allocation5 + $0x130] sm:$0xff]
        %v787 = vld [vmem:[#allocation5 + $0x138] sm:$0xff]
        %v788 = vld [vmem:[#allocation5 + $0x140] sm:$0xff]
        %v789 = vld [vmem:[#allocation5 + $0x148] sm:$0xff]
        %v790 = vld [vmem:[#allocation5 + $0x150] sm:$0xff]
        %v791 = vld [vmem:[#allocation5 + $0x158] sm:$0xff]
        %v792 = vld [vmem:[#allocation5 + $0x160] sm:$0xff]
        %v793 = vld [vmem:[#allocation5 + $0x168] sm:$0xff]
        %v794 = vld [vmem:[#allocation5 + $0x170] sm:$0xff]
        %v795 = vld [vmem:[#allocation5 + $0x178] sm:$0xff]
        %v796 = vld [vmem:[#allocation5 + $0x180] sm:$0xff]
        %v797 = vld [vmem:[#allocation5 + $0x188] sm:$0xff]
        %v798 = vld [vmem:[#allocation5 + $0x190] sm:$0xff]
        %v799 = vld [vmem:[#allocation5 + $0x198] sm:$0xff]
        %v800 = vld [vmem:[#allocation5 + $0x1a0] sm:$0xff]
        %v801 = vld [vmem:[#allocation5 + $0x1a8] sm:$0xff]
        %v802 = vld [vmem:[#allocation5 + $0x1b0] sm:$0xff]
        %v803 = vld [vmem:[#allocation5 + $0x1b8] sm:$0xff]
        %v804 = vld [vmem:[#allocation5 + $0x1c0] sm:$0xff]
        %v805 = vld [vmem:[#allocation5 + $0x1c8] sm:$0xff]
        %v806 = vld [vmem:[#allocation5 + $0x1d0] sm:$0xff]
        %v807 = vld [vmem:[#allocation5 + $0x1d8] sm:$0xff]
        %v808 = vld [vmem:[#allocation5 + $0x1e0] sm:$0xff]
        %v809 = vld [vmem:[#allocation5 + $0x1e8] sm:$0xff]
        %v810 = vld [vmem:[#allocation5 + $0x1f0] sm:$0xff]
        %v811 = vld [vmem:[#allocation5 + $0x1f8] sm:$0xff]
        %v812 = vld [vmem:[#allocation5 + $0x200] sm:$0xff]
        %v813 = vld [vmem:[#allocation5 + $0x208] sm:$0xff]
        %v814 = vld [vmem:[#allocation5 + $0x210] sm:$0xff]
        %v815 = vld [vmem:[#allocation5 + $0x218] sm:$0xff]
        %v816 = vld [vmem:[#allocation5 + $0x220] sm:$0xff]
        %v817 = vld [vmem:[#allocation5 + $0x228] sm:$0xff]
        %v818 = vld [vmem:[#allocation5 + $0x230] sm:$0xff]
        %v819 = vld [vmem:[#allocation5 + $0x238] sm:$0xff]
        %v820 = vld [vmem:[#allocation5 + $0x240] sm:$0xff]
        %v821 = vld [vmem:[#allocation5 + $0x248] sm:$0xff]
        %v822 = vld [vmem:[#allocation5 + $0x250] sm:$0xff]
        %v823 = vld [vmem:[#allocation5 + $0x258] sm:$0xff]
        %v824 = vld [vmem:[#allocation5 + $0x260] sm:$0xff]
        %v825 = vld [vmem:[#allocation5 + $0x268] sm:$0xff]
        %v826 = vld [vmem:[#allocation5 + $0x270] sm:$0xff]
        %v827 = vld [vmem:[#allocation5 + $0x278] sm:$0xff]
        %v828 = vld [vmem:[#allocation5 + $0x280] sm:$0xff]
        %v829 = vld [vmem:[#allocation5 + $0x288] sm:$0xff]
        %v830 = vld [vmem:[#allocation5 + $0x290] sm:$0xff]
        %v831 = vld [vmem:[#allocation5 + $0x298] sm:$0xff]
        %v832 = vld [vmem:[#allocation5 + $0x2a0] sm:$0xff]
        %v833 = vld [vmem:[#allocation5 + $0x2a8] sm:$0xff]
        %v834 = vld [vmem:[#allocation5 + $0x2b0] sm:$0xff]
        %v835 = vld [vmem:[#allocation5 + $0x2b8] sm:$0xff]
        %v836 = vld [vmem:[#allocation5 + $0x2c0] sm:$0xff]
        %v837 = vld [vmem:[#allocation5 + $0x2c8] sm:$0xff]
        %v838 = vld [vmem:[#allocation5 + $0x2d0] sm:$0xff]
        %v839 = vld [vmem:[#allocation5 + $0x2d8] sm:$0xff]
        %v840 = vld [vmem:[#allocation5 + $0x2e0] sm:$0xff]
        %v841 = vld [vmem:[#allocation5 + $0x2e8] sm:$0xff]
        %v842 = vld [vmem:[#allocation5 + $0x2f0] sm:$0xff]
        %v843 = vld [vmem:[#allocation5 + $0x2f8] sm:$0xff]
        %v844 = vld [vmem:[#allocation5 + $0x300] sm:$0xff]
        %v845 = vld [vmem:[#allocation5 + $0x308] sm:$0xff]
        %v846 = vld [vmem:[#allocation5 + $0x310] sm:$0xff]
        %v847 = vld [vmem:[#allocation5 + $0x318] sm:$0xff]
        %v848 = vld [vmem:[#allocation5 + $0x320] sm:$0xff]
        %v849 = vld [vmem:[#allocation5 + $0x328] sm:$0xff]
        %v850 = vld [vmem:[#allocation5 + $0x330] sm:$0xff]
        %v851 = vld [vmem:[#allocation5 + $0x338] sm:$0xff]
        %v852 = vld [vmem:[#allocation5 + $0x340] sm:$0xff]
        %v853 = vld [vmem:[#allocation5 + $0x348] sm:$0xff]
        %v854 = vld [vmem:[#allocation5 + $0x350] sm:$0xff]
        %v855 = vld [vmem:[#allocation5 + $0x358] sm:$0xff]
        %v856 = vld [vmem:[#allocation5 + $0x360] sm:$0xff]
        %v857 = vld [vmem:[#allocation5 + $0x368] sm:$0xff]
        %v858 = vld [vmem:[#allocation5 + $0x370] sm:$0xff]
        %v859 = vld [vmem:[#allocation5 + $0x378] sm:$0xff]
        %v860 = vld [vmem:[#allocation5 + $0x380] sm:$0xff]
        %v861 = vld [vmem:[#allocation5 + $0x388] sm:$0xff]
        %v862 = vld [vmem:[#allocation5 + $0x390] sm:$0xff]
        %v863 = vld [vmem:[#allocation5 + $0x398] sm:$0xff]
        %v864 = vld [vmem:[#allocation5 + $0x3a0] sm:$0xff]
        %v865 = vld [vmem:[#allocation5 + $0x3a8] sm:$0xff]
        %v866 = vld [vmem:[#allocation5 + $0x3b0] sm:$0xff]
        %v867 = vld [vmem:[#allocation5 + $0x3b8] sm:$0xff]
        %v868 = vld [vmem:[#allocation5 + $0x3c0] sm:$0xff]
        %v869 = vld [vmem:[#allocation5 + $0x3c8] sm:$0xff]
        %v870 = vld [vmem:[#allocation5 + $0x3d0] sm:$0xff]
        %v871 = vld [vmem:[#allocation5 + $0x3d8] sm:$0xff]
        %v872 = vld [vmem:[#allocation5 + $0x3e0] sm:$0xff]
        %v873 = vld [vmem:[#allocation5 + $0x3e8] sm:$0xff]
        %v874 = vld [vmem:[#allocation5 + $0x3f0] sm:$0xff]
        %v875 = vld [vmem:[#allocation5 + $0x3f8] sm:$0xff]
        %v876 = vld [vmem:[#allocation5 + $0x400] sm:$0xff]
        %v877 = vld [vmem:[#allocation5 + $0x408] sm:$0xff]
        %v878 = vld [vmem:[#allocation5 + $0x410] sm:$0xff]
        %v879 = vld [vmem:[#allocation5 + $0x418] sm:$0xff]
        %v880 = vld [vmem:[#allocation5 + $0x420] sm:$0xff]
        %v881 = vld [vmem:[#allocation5 + $0x428] sm:$0xff]
        %v882 = vld [vmem:[#allocation5 + $0x430] sm:$0xff]
        %v883 = vld [vmem:[#allocation5 + $0x438] sm:$0xff]
        %v884 = vld [vmem:[#allocation5 + $0x440] sm:$0xff]
        %v885 = vld [vmem:[#allocation5 + $0x448] sm:$0xff]
        %v886 = vld [vmem:[#allocation5 + $0x450] sm:$0xff]
        %v887 = vld [vmem:[#allocation5 + $0x458] sm:$0xff]
        %v888 = vld [vmem:[#allocation5 + $0x460] sm:$0xff]
        %v889 = vld [vmem:[#allocation5 + $0x468] sm:$0xff]
        %v890 = vld [vmem:[#allocation5 + $0x470] sm:$0xff]
        %v891 = vld [vmem:[#allocation5 + $0x478] sm:$0xff]
        %v892 = vld [vmem:[#allocation5 + $0x480] sm:$0xff]
        %v893 = vld [vmem:[#allocation5 + $0x488] sm:$0xff]
        %v894 = vld [vmem:[#allocation5 + $0x490] sm:$0xff]
        %v895 = vld [vmem:[#allocation5 + $0x498] sm:$0xff]
        %v896 = vld [vmem:[#allocation5 + $0x4a0] sm:$0xff]
        %v897 = vld [vmem:[#allocation5 + $0x4a8] sm:$0xff]
        %v898 = vld [vmem:[#allocation5 + $0x4b0] sm:$0xff]
        %v899 = vld [vmem:[#allocation5 + $0x4b8] sm:$0xff]
        %v900 = vld [vmem:[#allocation5 + $0x4c0] sm:$0xff]
        %v901 = vld [vmem:[#allocation5 + $0x4c8] sm:$0xff]
        %v902 = vld [vmem:[#allocation5 + $0x4d0] sm:$0xff]
        %v903 = vld [vmem:[#allocation5 + $0x4d8] sm:$0xff]
        %v904 = vld [vmem:[#allocation5 + $0x4e0] sm:$0xff]
        %v905 = vld [vmem:[#allocation5 + $0x4e8] sm:$0xff]
        %v906 = vld [vmem:[#allocation5 + $0x4f0] sm:$0xff]
        %v907 = vld [vmem:[#allocation5 + $0x4f8] sm:$0xff]
        %v908 = vld [vmem:[#allocation5 + $0x500] sm:$0xff]
        %v909 = vld [vmem:[#allocation5 + $0x508] sm:$0xff]
        %v910 = vld [vmem:[#allocation5 + $0x510] sm:$0xff]
        %v911 = vld [vmem:[#allocation5 + $0x518] sm:$0xff]
        %v912 = vld [vmem:[#allocation5 + $0x520] sm:$0xff]
        %v913 = vld [vmem:[#allocation5 + $0x528] sm:$0xff]
        %v914 = vld [vmem:[#allocation5 + $0x530] sm:$0xff]
        %v915 = vld [vmem:[#allocation5 + $0x538] sm:$0xff]
        %v916 = vld [vmem:[#allocation5 + $0x540] sm:$0xff]
        %v917 = vld [vmem:[#allocation5 + $0x548] sm:$0xff]
        %v918 = vld [vmem:[#allocation5 + $0x550] sm:$0xff]
        %v919 = vld [vmem:[#allocation5 + $0x558] sm:$0xff]
        %v920 = vld [vmem:[#allocation5 + $0x560] sm:$0xff]
        %v921 = vld [vmem:[#allocation5 + $0x568] sm:$0xff]
        %v922 = vld [vmem:[#allocation5 + $0x570] sm:$0xff]
        %v923 = vld [vmem:[#allocation5 + $0x578] sm:$0xff]
        %v924 = vld [vmem:[#allocation5 + $0x580] sm:$0xff]
        %v925 = vld [vmem:[#allocation5 + $0x588] sm:$0xff]
        %v926 = vld [vmem:[#allocation5 + $0x590] sm:$0xff]
        %v927 = vld [vmem:[#allocation5 + $0x598] sm:$0xff]
        %v928 = vld [vmem:[#allocation5 + $0x5a0] sm:$0xff]
        %v929 = vld [vmem:[#allocation5 + $0x5a8] sm:$0xff]
        %v930 = vld [vmem:[#allocation5 + $0x5b0] sm:$0xff]
        %v931 = vld [vmem:[#allocation5 + $0x5b8] sm:$0xff]
        %v932 = vld [vmem:[#allocation5 + $0x5c0] sm:$0xff]
        %v933 = vld [vmem:[#allocation5 + $0x5c8] sm:$0xff]
        %v934 = vld [vmem:[#allocation5 + $0x5d0] sm:$0xff]
        %v935 = vld [vmem:[#allocation5 + $0x5d8] sm:$0xff]
        %v936 = vld [vmem:[#allocation5 + $0x5e0] sm:$0xff]
        %v937 = vld [vmem:[#allocation5 + $0x5e8] sm:$0xff]
        %v938 = vld [vmem:[#allocation5 + $0x5f0] sm:$0xff]
        %v939 = vld [vmem:[#allocation5 + $0x5f8] sm:$0xff]
        %v940 = vld [vmem:[#allocation5 + $0x600] sm:$0xff]
        %v941 = vld [vmem:[#allocation5 + $0x608] sm:$0xff]
        %v942 = vld [vmem:[#allocation5 + $0x610] sm:$0xff]
        %v943 = vld [vmem:[#allocation5 + $0x618] sm:$0xff]
        %v944 = vld [vmem:[#allocation5 + $0x620] sm:$0xff]
        %v945 = vld [vmem:[#allocation5 + $0x628] sm:$0xff]
        %v946 = vld [vmem:[#allocation5 + $0x630] sm:$0xff]
        %v947 = vld [vmem:[#allocation5 + $0x638] sm:$0xff]
        %v948 = vld [vmem:[#allocation5 + $0x640] sm:$0xff]
        %v949 = vld [vmem:[#allocation5 + $0x648] sm:$0xff]
        %v950 = vld [vmem:[#allocation5 + $0x650] sm:$0xff]
        %v951 = vld [vmem:[#allocation5 + $0x658] sm:$0xff]
        %v952 = vld [vmem:[#allocation5 + $0x660] sm:$0xff]
        %v953 = vld [vmem:[#allocation5 + $0x668] sm:$0xff]
        %v954 = vld [vmem:[#allocation5 + $0x670] sm:$0xff]
        %v955 = vld [vmem:[#allocation5 + $0x678] sm:$0xff]
        %v956 = vld [vmem:[#allocation5 + $0x680] sm:$0xff]
        %v957 = vld [vmem:[#allocation5 + $0x688] sm:$0xff]
        %v958 = vld [vmem:[#allocation5 + $0x690] sm:$0xff]
        %v959 = vld [vmem:[#allocation5 + $0x698] sm:$0xff]
        %v960 = vld [vmem:[#allocation5 + $0x6a0] sm:$0xff]
        %v961 = vld [vmem:[#allocation5 + $0x6a8] sm:$0xff]
        %v962 = vld [vmem:[#allocation5 + $0x6b0] sm:$0xff]
        %v963 = vld [vmem:[#allocation5 + $0x6b8] sm:$0xff]
        %v964 = vld [vmem:[#allocation5 + $0x6c0] sm:$0xff]
        %v965 = vld [vmem:[#allocation5 + $0x6c8] sm:$0xff]
        %v966 = vld [vmem:[#allocation5 + $0x6d0] sm:$0xff]
        %v967 = vld [vmem:[#allocation5 + $0x6d8] sm:$0xff]
        %v968 = vld [vmem:[#allocation5 + $0x6e0] sm:$0xff]
        %v969 = vld [vmem:[#allocation5 + $0x6e8] sm:$0xff]
        %v970 = vld [vmem:[#allocation5 + $0x6f0] sm:$0xff]
        %v971 = vld [vmem:[#allocation5 + $0x6f8] sm:$0xff]
        %v972 = vld [vmem:[#allocation5 + $0x700] sm:$0xff]
        %v973 = vld [vmem:[#allocation5 + $0x708] sm:$0xff]
        %v974 = vld [vmem:[#allocation5 + $0x710] sm:$0xff]
        %v975 = vld [vmem:[#allocation5 + $0x718] sm:$0xff]
        %v976 = vld [vmem:[#allocation5 + $0x720] sm:$0xff]
        %v977 = vld [vmem:[#allocation5 + $0x728] sm:$0xff]
        %v978 = vld [vmem:[#allocation5 + $0x730] sm:$0xff]
        %v979 = vld [vmem:[#allocation5 + $0x738] sm:$0xff]
        %v980 = vld [vmem:[#allocation5 + $0x740] sm:$0xff]
        %v981 = vld [vmem:[#allocation5 + $0x748] sm:$0xff]
        %v982 = vld [vmem:[#allocation5 + $0x750] sm:$0xff]
        %v983 = vld [vmem:[#allocation5 + $0x758] sm:$0xff]
        %v984 = vld [vmem:[#allocation5 + $0x760] sm:$0xff]
        %v985 = vld [vmem:[#allocation5 + $0x768] sm:$0xff]
        %v986 = vld [vmem:[#allocation5 + $0x770] sm:$0xff]
        %v987 = vld [vmem:[#allocation5 + $0x778] sm:$0xff]
        %v988 = vld [vmem:[#allocation5 + $0x780] sm:$0xff]
        %v989 = vld [vmem:[#allocation5 + $0x788] sm:$0xff]
        %v990 = vld [vmem:[#allocation5 + $0x790] sm:$0xff]
        %v991 = vld [vmem:[#allocation5 + $0x798] sm:$0xff]
        %v992 = vld [vmem:[#allocation5 + $0x7a0] sm:$0xff]
        %v993 = vld [vmem:[#allocation5 + $0x7a8] sm:$0xff]
        %v994 = vld [vmem:[#allocation5 + $0x7b0] sm:$0xff]
        %v995 = vld [vmem:[#allocation5 + $0x7b8] sm:$0xff]
        %v996 = vld [vmem:[#allocation5 + $0x7c0] sm:$0xff]
        %v997 = vld [vmem:[#allocation5 + $0x7c8] sm:$0xff]
        %v998 = vld [vmem:[#allocation5 + $0x7d0] sm:$0xff]
        %v999 = vld [vmem:[#allocation5 + $0x7d8] sm:$0xff]
        %v1000 = vld [vmem:[#allocation5 + $0x7e0] sm:$0xff]
        %v1001 = vld [vmem:[#allocation5 + $0x7e8] sm:$0xff]
        %v1002 = vld [vmem:[#allocation5 + $0x7f0] sm:$0xff]
        %v1003 = vld [vmem:[#allocation5 + $0x7f8] sm:$0xff]
        %1004 = vmatprep.subr.mxu0 %v809
        %1005 = vmatpush1.msra.mxu0 %v808
        %1006 = vmatprep.subr.mxu0 %v805
        %1007 = vmatpush1.msra.mxu0 %v804
        %1008 = vmatprep.subr.mxu0 %v801
        %1009 = vmatpush1.msra.mxu0 %v800
        %1010 = vmatprep.subr.mxu0 %v797
        %1011 = vmatpush1.msra.mxu0 %v796
        %1012 = vmatprep.subr.mxu0 %v793
        %1013 = vmatpush1.msra.mxu0 %v792
        %1014 = vmatprep.subr.mxu0 %v789
        %1015 = vmatpush1.msra.mxu0 %v788
        %1016 = vmatprep.subr.mxu0 %v785
        %1017 = vmatpush1.msra.mxu0 %v784
        %1018 = vmatprep.subr.mxu0 %v781
        %1019 = vmatpush1.msra.mxu0 %v780
        %1020 = vmatprep.subr.mxu0 %v777
        %1021 = vmatpush1.msra.mxu0 %v776
        %1022 = vmatprep.subr.mxu0 %v773
        %1023 = vmatpush1.msra.mxu0 %v772
        %1024 = vmatprep.subr.mxu0 %v769
        %1025 = vmatpush1.msra.mxu0 %v768
        %1026 = vmatprep.subr.mxu0 %v765
        %1027 = vmatpush1.msra.mxu0 %v764
        %1028 = vmatprep.subr.mxu0 %v761
        %1029 = vmatpush1.msra.mxu0 %v760
        %1030 = vmatprep.subr.mxu0 %v757
        %1031 = vmatpush1.msra.mxu0 %v756
        %1032 = vmatprep.subr.mxu0 %v753
        %1033 = vmatpush1.msra.mxu0 %v752
        %1034 = vmatprep.subr.mxu0 %v749
        %1035 = vmatpush1.msra.mxu0 %v748
        %1036 = vmatprep.subr.mxu0 %v873
        %1037 = vmatpush2.msra.mxu0 %v872
        %1038 = vmatprep.subr.mxu0 %v869
        %1039 = vmatpush2.msra.mxu0 %v868
        %1040 = vmatprep.subr.mxu0 %v865
        %1041 = vmatpush2.msra.mxu0 %v864
        %1042 = vmatprep.subr.mxu0 %v861
        %1043 = vmatpush2.msra.mxu0 %v860
        %1044 = vmatprep.subr.mxu0 %v857
        %1045 = vmatpush2.msra.mxu0 %v856
        %1046 = vmatprep.subr.mxu0 %v853
        %1047 = vmatpush2.msra.mxu0 %v852
        %1048 = vmatprep.subr.mxu0 %v849
        %1049 = vmatpush2.msra.mxu0 %v848
        %1050 = vmatprep.subr.mxu0 %v845
        %1051 = vmatpush2.msra.mxu0 %v844
        %1052 = vmatprep.subr.mxu0 %v841
        %1053 = vmatpush2.msra.mxu0 %v840
        %1054 = vmatprep.subr.mxu0 %v837
        %1055 = vmatpush2.msra.mxu0 %v836
        %1056 = vmatprep.subr.mxu0 %v833
        %1057 = vmatpush2.msra.mxu0 %v832
        %1058 = vmatprep.subr.mxu0 %v829
        %1059 = vmatpush2.msra.mxu0 %v828
        %1060 = vmatprep.subr.mxu0 %v825
        %1061 = vmatpush2.msra.mxu0 %v824
        %1062 = vmatprep.subr.mxu0 %v821
        %1063 = vmatpush2.msra.mxu0 %v820
        %1064 = vmatprep.subr.mxu0 %v817
        %1065 = vmatpush2.msra.mxu0 %v816
        %1066 = vmatprep.subr.mxu0 %v813
        %1067 = vmatpush2.msra.mxu0 %v812
        %1068 = vmatprep.mubr.f32.mxu0 %v685
        %1069 = vmatmul.mubr.f32.gmra.mxu0 %v684
        %v1070 = vpop.f32.mrf.mxu0
        %v1071 = vadd.f32 0.0, %v1070
        %v1072 = vpop.f32.mrf.mxu0
        %v1073 = vadd.f32 0.0, %v1072
        %1074 = vmatprep.mubr.f32.mxu0 %v689
        %1075 = vmatmul.mubr.f32.gmra.mxu0 %v688
        %v1076 = vpop.f32.mrf.mxu0
        %v1077 = vadd.f32 0.0, %v1076
        %v1078 = vpop.f32.mrf.mxu0
        %v1079 = vadd.f32 0.0, %v1078
        %1080 = vmatprep.mubr.f32.mxu0 %v693
        %1081 = vmatmul.mubr.f32.gmra.mxu0 %v692
        %v1082 = vpop.f32.mrf.mxu0
        %v1083 = vadd.f32 0.0, %v1082
        %v1084 = vpop.f32.mrf.mxu0
        %v1085 = vadd.f32 0.0, %v1084
        %1086 = vmatprep.mubr.f32.mxu0 %v697
        %1087 = vmatmul.mubr.f32.gmra.mxu0 %v696
        %v1088 = vpop.f32.mrf.mxu0
        %v1089 = vadd.f32 0.0, %v1088
        %v1090 = vpop.f32.mrf.mxu0
        %v1091 = vadd.f32 0.0, %v1090
        %1092 = vmatprep.mubr.f32.mxu0 %v701
        %1093 = vmatmul.mubr.f32.gmra.mxu0 %v700
        %v1094 = vpop.f32.mrf.mxu0
        %v1095 = vadd.f32 0.0, %v1094
        %v1096 = vpop.f32.mrf.mxu0
        %v1097 = vadd.f32 0.0, %v1096
        %1098 = vmatprep.mubr.f32.mxu0 %v705
        %1099 = vmatmul.mubr.f32.gmra.mxu0 %v704
        %v1100 = vpop.f32.mrf.mxu0
        %v1101 = vadd.f32 0.0, %v1100
        %v1102 = vpop.f32.mrf.mxu0
        %v1103 = vadd.f32 0.0, %v1102
        %1104 = vmatprep.mubr.f32.mxu0 %v709
        %1105 = vmatmul.mubr.f32.gmra.mxu0 %v708
        %v1106 = vpop.f32.mrf.mxu0
        %v1107 = vadd.f32 0.0, %v1106
        %v1108 = vpop.f32.mrf.mxu0
        %v1109 = vadd.f32 0.0, %v1108
        %1110 = vmatprep.mubr.f32.mxu0 %v713
        %1111 = vmatmul.mubr.f32.gmra.mxu0 %v712
        %v1112 = vpop.f32.mrf.mxu0
        %v1113 = vadd.f32 0.0, %v1112
        %v1114 = vpop.f32.mrf.mxu0
        %v1115 = vadd.f32 0.0, %v1114
        %1116 = vmatprep.mubr.f32.mxu0 %v717
        %1117 = vmatmul.mubr.f32.gmra.mxu0 %v716
        %v1118 = vpop.f32.mrf.mxu0
        %v1119 = vadd.f32 0.0, %v1118
        %v1120 = vpop.f32.mrf.mxu0
        %v1121 = vadd.f32 0.0, %v1120
        %1122 = vmatprep.mubr.f32.mxu0 %v721
        %1123 = vmatmul.mubr.f32.gmra.mxu0 %v720
        %v1124 = vpop.f32.mrf.mxu0
        %v1125 = vadd.f32 0.0, %v1124
        %v1126 = vpop.f32.mrf.mxu0
        %v1127 = vadd.f32 0.0, %v1126
        %1128 = vmatprep.mubr.f32.mxu0 %v725
        %1129 = vmatmul.mubr.f32.gmra.mxu0 %v724
        %v1130 = vpop.f32.mrf.mxu0
        %v1131 = vadd.f32 0.0, %v1130
        %v1132 = vpop.f32.mrf.mxu0
        %v1133 = vadd.f32 0.0, %v1132
        %1134 = vmatprep.mubr.f32.mxu0 %v729
        %1135 = vmatmul.mubr.f32.gmra.mxu0 %v728
        %v1136 = vpop.f32.mrf.mxu0
        %v1137 = vadd.f32 0.0, %v1136
        %v1138 = vpop.f32.mrf.mxu0
        %v1139 = vadd.f32 0.0, %v1138
        %1140 = vmatprep.mubr.f32.mxu0 %v733
        %1141 = vmatmul.mubr.f32.gmra.mxu0 %v732
        %v1142 = vpop.f32.mrf.mxu0
        %v1143 = vadd.f32 0.0, %v1142
        %v1144 = vpop.f32.mrf.mxu0
        %v1145 = vadd.f32 0.0, %v1144
        %1146 = vmatprep.mubr.f32.mxu0 %v737
        %1147 = vmatmul.mubr.f32.gmra.mxu0 %v736
        %v1148 = vpop.f32.mrf.mxu0
        %v1149 = vadd.f32 0.0, %v1148
        %v1150 = vpop.f32.mrf.mxu0
        %v1151 = vadd.f32 0.0, %v1150
        %1152 = vmatprep.mubr.f32.mxu0 %v741
        %1153 = vmatmul.mubr.f32.gmra.mxu0 %v740
        %v1154 = vpop.f32.mrf.mxu0
        %v1155 = vadd.f32 0.0, %v1154
        %v1156 = vpop.f32.mrf.mxu0
        %v1157 = vadd.f32 0.0, %v1156
        %1158 = vmatprep.mubr.f32.mxu0 %v745
        %1159 = vmatmul.mubr.f32.gmra.mxu0 %v744
        %v1160 = vpop.f32.mrf.mxu0
        %v1161 = vadd.f32 0.0, %v1160
        %v1162 = vpop.f32.mrf.mxu0
        %v1163 = vadd.f32 0.0, %v1162
        %1164 = vdwg.mxu0
        %1165 = vmatprep.subr.mxu0 %v937
        %1166 = vmatpush1.msra.mxu0 %v936
        %1167 = vmatprep.subr.mxu0 %v933
        %1168 = vmatpush1.msra.mxu0 %v932
        %1169 = vmatprep.subr.mxu0 %v929
        %1170 = vmatpush1.msra.mxu0 %v928
        %1171 = vmatprep.subr.mxu0 %v925
        %1172 = vmatpush1.msra.mxu0 %v924
        %1173 = vmatprep.subr.mxu0 %v921
        %1174 = vmatpush1.msra.mxu0 %v920
        %1175 = vmatprep.subr.mxu0 %v917
        %1176 = vmatpush1.msra.mxu0 %v916
        %1177 = vmatprep.subr.mxu0 %v913
        %1178 = vmatpush1.msra.mxu0 %v912
        %1179 = vmatprep.subr.mxu0 %v909
        %1180 = vmatpush1.msra.mxu0 %v908
        %1181 = vmatprep.subr.mxu0 %v905
        %1182 = vmatpush1.msra.mxu0 %v904
        %1183 = vmatprep.subr.mxu0 %v901
        %1184 = vmatpush1.msra.mxu0 %v900
        %1185 = vmatprep.subr.mxu0 %v897
        %1186 = vmatpush1.msra.mxu0 %v896
        %1187 = vmatprep.subr.mxu0 %v893
        %1188 = vmatpush1.msra.mxu0 %v892
        %1189 = vmatprep.subr.mxu0 %v889
        %1190 = vmatpush1.msra.mxu0 %v888
        %1191 = vmatprep.subr.mxu0 %v885
        %1192 = vmatpush1.msra.mxu0 %v884
        %1193 = vmatprep.subr.mxu0 %v881
        %1194 = vmatpush1.msra.mxu0 %v880
        %1195 = vmatprep.subr.mxu0 %v877
        %1196 = vmatpush1.msra.mxu0 %v876
        %1197 = vmatprep.subr.mxu0 %v1001
        %1198 = vmatpush2.msra.mxu0 %v1000
        %1199 = vmatprep.subr.mxu0 %v997
        %1200 = vmatpush2.msra.mxu0 %v996
        %1201 = vmatprep.subr.mxu0 %v993
        %1202 = vmatpush2.msra.mxu0 %v992
        %1203 = vmatprep.subr.mxu0 %v989
        %1204 = vmatpush2.msra.mxu0 %v988
        %1205 = vmatprep.subr.mxu0 %v985
        %1206 = vmatpush2.msra.mxu0 %v984
        %1207 = vmatprep.subr.mxu0 %v981
        %1208 = vmatpush2.msra.mxu0 %v980
        %1209 = vmatprep.subr.mxu0 %v977
        %1210 = vmatpush2.msra.mxu0 %v976
        %1211 = vmatprep.subr.mxu0 %v973
        %1212 = vmatpush2.msra.mxu0 %v972
        %1213 = vmatprep.subr.mxu0 %v969
        %1214 = vmatpush2.msra.mxu0 %v968
        %1215 = vmatprep.subr.mxu0 %v965
        %1216 = vmatpush2.msra.mxu0 %v964
        %1217 = vmatprep.subr.mxu0 %v961
        %1218 = vmatpush2.msra.mxu0 %v960
        %1219 = vmatprep.subr.mxu0 %v957
        %1220 = vmatpush2.msra.mxu0 %v956
        %1221 = vmatprep.subr.mxu0 %v953
        %1222 = vmatpush2.msra.mxu0 %v952
        %1223 = vmatprep.subr.mxu0 %v949
        %1224 = vmatpush2.msra.mxu0 %v948
        %1225 = vmatprep.subr.mxu0 %v945
        %1226 = vmatpush2.msra.mxu0 %v944
        %1227 = vmatprep.subr.mxu0 %v941
        %1228 = vmatpush2.msra.mxu0 %v940
        %1229 = vmatprep.mubr.f32.mxu0 %v687
        %1230 = vmatmul.mubr.f32.gmra.mxu0 %v686
        %v1231 = vpop.f32.mrf.mxu0
        %v1232 = vadd.f32 %v1071, %v1231
        %v1233 = vpop.f32.mrf.mxu0
        %v1234 = vadd.f32 %v1073, %v1233
        %1235 = vmatprep.mubr.f32.mxu0 %v691
        %1236 = vmatmul.mubr.f32.gmra.mxu0 %v690
        %v1237 = vpop.f32.mrf.mxu0
        %v1238 = vadd.f32 %v1077, %v1237
        %v1239 = vpop.f32.mrf.mxu0
        %v1240 = vadd.f32 %v1079, %v1239
        %1241 = vmatprep.mubr.f32.mxu0 %v695
        %1242 = vmatmul.mubr.f32.gmra.mxu0 %v694
        %v1243 = vpop.f32.mrf.mxu0
        %v1244 = vadd.f32 %v1083, %v1243
        %v1245 = vpop.f32.mrf.mxu0
        %v1246 = vadd.f32 %v1085, %v1245
        %1247 = vmatprep.mubr.f32.mxu0 %v699
        %1248 = vmatmul.mubr.f32.gmra.mxu0 %v698
        %v1249 = vpop.f32.mrf.mxu0
        %v1250 = vadd.f32 %v1089, %v1249
        %v1251 = vpop.f32.mrf.mxu0
        %v1252 = vadd.f32 %v1091, %v1251
        %1253 = vmatprep.mubr.f32.mxu0 %v703
        %1254 = vmatmul.mubr.f32.gmra.mxu0 %v702
        %v1255 = vpop.f32.mrf.mxu0
        %v1256 = vadd.f32 %v1095, %v1255
        %v1257 = vpop.f32.mrf.mxu0
        %v1258 = vadd.f32 %v1097, %v1257
        %1259 = vmatprep.mubr.f32.mxu0 %v707
        %1260 = vmatmul.mubr.f32.gmra.mxu0 %v706
        %v1261 = vpop.f32.mrf.mxu0
        %v1262 = vadd.f32 %v1101, %v1261
        %v1263 = vpop.f32.mrf.mxu0
        %v1264 = vadd.f32 %v1103, %v1263
        %1265 = vmatprep.mubr.f32.mxu0 %v711
        %1266 = vmatmul.mubr.f32.gmra.mxu0 %v710
        %v1267 = vpop.f32.mrf.mxu0
        %v1268 = vadd.f32 %v1107, %v1267
        %v1269 = vpop.f32.mrf.mxu0
        %v1270 = vadd.f32 %v1109, %v1269
        %1271 = vmatprep.mubr.f32.mxu0 %v715
        %1272 = vmatmul.mubr.f32.gmra.mxu0 %v714
        %v1273 = vpop.f32.mrf.mxu0
        %v1274 = vadd.f32 %v1113, %v1273
        %v1275 = vpop.f32.mrf.mxu0
        %v1276 = vadd.f32 %v1115, %v1275
        %1277 = vmatprep.mubr.f32.mxu0 %v719
        %1278 = vmatmul.mubr.f32.gmra.mxu0 %v718
        %v1279 = vpop.f32.mrf.mxu0
        %v1280 = vadd.f32 %v1119, %v1279
        %v1281 = vpop.f32.mrf.mxu0
        %v1282 = vadd.f32 %v1121, %v1281
        %1283 = vmatprep.mubr.f32.mxu0 %v723
        %1284 = vmatmul.mubr.f32.gmra.mxu0 %v722
        %v1285 = vpop.f32.mrf.mxu0
        %v1286 = vadd.f32 %v1125, %v1285
        %v1287 = vpop.f32.mrf.mxu0
        %v1288 = vadd.f32 %v1127, %v1287
        %1289 = vmatprep.mubr.f32.mxu0 %v727
        %1290 = vmatmul.mubr.f32.gmra.mxu0 %v726
        %v1291 = vpop.f32.mrf.mxu0
        %v1292 = vadd.f32 %v1131, %v1291
        %v1293 = vpop.f32.mrf.mxu0
        %v1294 = vadd.f32 %v1133, %v1293
        %1295 = vmatprep.mubr.f32.mxu0 %v731
        %1296 = vmatmul.mubr.f32.gmra.mxu0 %v730
        %v1297 = vpop.f32.mrf.mxu0
        %v1298 = vadd.f32 %v1137, %v1297
        %v1299 = vpop.f32.mrf.mxu0
        %v1300 = vadd.f32 %v1139, %v1299
        %1301 = vmatprep.mubr.f32.mxu0 %v735
        %1302 = vmatmul.mubr.f32.gmra.mxu0 %v734
        %v1303 = vpop.f32.mrf.mxu0
        %v1304 = vadd.f32 %v1143, %v1303
        %v1305 = vpop.f32.mrf.mxu0
        %v1306 = vadd.f32 %v1145, %v1305
        %1307 = vmatprep.mubr.f32.mxu0 %v739
        %1308 = vmatmul.mubr.f32.gmra.mxu0 %v738
        %v1309 = vpop.f32.mrf.mxu0
        %v1310 = vadd.f32 %v1149, %v1309
        %v1311 = vpop.f32.mrf.mxu0
        %v1312 = vadd.f32 %v1151, %v1311
        %1313 = vmatprep.mubr.f32.mxu0 %v743
        %1314 = vmatmul.mubr.f32.gmra.mxu0 %v742
        %v1315 = vpop.f32.mrf.mxu0
        %v1316 = vadd.f32 %v1155, %v1315
        %v1317 = vpop.f32.mrf.mxu0
        %v1318 = vadd.f32 %v1157, %v1317
        %1319 = vmatprep.mubr.f32.mxu0 %v747
        %1320 = vmatmul.mubr.f32.gmra.mxu0 %v746
        %v1321 = vpop.f32.mrf.mxu0
        %v1322 = vadd.f32 %v1161, %v1321
        %v1323 = vpop.f32.mrf.mxu0
        %v1324 = vadd.f32 %v1163, %v1323
        %1325 = vdwg.mxu0
        %1326 = vmatprep.subr.mxu0 %v811
        %1327 = vmatpush1.msra.mxu0 %v810
        %1328 = vmatprep.subr.mxu0 %v807
        %1329 = vmatpush1.msra.mxu0 %v806
        %1330 = vmatprep.subr.mxu0 %v803
        %1331 = vmatpush1.msra.mxu0 %v802
        %1332 = vmatprep.subr.mxu0 %v799
        %1333 = vmatpush1.msra.mxu0 %v798
        %1334 = vmatprep.subr.mxu0 %v795
        %1335 = vmatpush1.msra.mxu0 %v794
        %1336 = vmatprep.subr.mxu0 %v791
        %1337 = vmatpush1.msra.mxu0 %v790
        %1338 = vmatprep.subr.mxu0 %v787
        %1339 = vmatpush1.msra.mxu0 %v786
        %1340 = vmatprep.subr.mxu0 %v783
        %1341 = vmatpush1.msra.mxu0 %v782
        %1342 = vmatprep.subr.mxu0 %v779
        %1343 = vmatpush1.msra.mxu0 %v778
        %1344 = vmatprep.subr.mxu0 %v775
        %1345 = vmatpush1.msra.mxu0 %v774
        %1346 = vmatprep.subr.mxu0 %v771
        %1347 = vmatpush1.msra.mxu0 %v770
        %1348 = vmatprep.subr.mxu0 %v767
        %1349 = vmatpush1.msra.mxu0 %v766
        %1350 = vmatprep.subr.mxu0 %v763
        %1351 = vmatpush1.msra.mxu0 %v762
        %1352 = vmatprep.subr.mxu0 %v759
        %1353 = vmatpush1.msra.mxu0 %v758
        %1354 = vmatprep.subr.mxu0 %v755
        %1355 = vmatpush1.msra.mxu0 %v754
        %1356 = vmatprep.subr.mxu0 %v751
        %1357 = vmatpush1.msra.mxu0 %v750
        %1358 = vmatprep.subr.mxu0 %v875
        %1359 = vmatpush2.msra.mxu0 %v874
        %1360 = vmatprep.subr.mxu0 %v871
        %1361 = vmatpush2.msra.mxu0 %v870
        %1362 = vmatprep.subr.mxu0 %v867
        %1363 = vmatpush2.msra.mxu0 %v866
        %1364 = vmatprep.subr.mxu0 %v863
        %1365 = vmatpush2.msra.mxu0 %v862
        %1366 = vmatprep.subr.mxu0 %v859
        %1367 = vmatpush2.msra.mxu0 %v858
        %1368 = vmatprep.subr.mxu0 %v855
        %1369 = vmatpush2.msra.mxu0 %v854
        %1370 = vmatprep.subr.mxu0 %v851
        %1371 = vmatpush2.msra.mxu0 %v850
        %1372 = vmatprep.subr.mxu0 %v847
        %1373 = vmatpush2.msra.mxu0 %v846
        %1374 = vmatprep.subr.mxu0 %v843
        %1375 = vmatpush2.msra.mxu0 %v842
        %1376 = vmatprep.subr.mxu0 %v839
        %1377 = vmatpush2.msra.mxu0 %v838
        %1378 = vmatprep.subr.mxu0 %v835
        %1379 = vmatpush2.msra.mxu0 %v834
        %1380 = vmatprep.subr.mxu0 %v831
        %1381 = vmatpush2.msra.mxu0 %v830
        %1382 = vmatprep.subr.mxu0 %v827
        %1383 = vmatpush2.msra.mxu0 %v826
        %1384 = vmatprep.subr.mxu0 %v823
        %1385 = vmatpush2.msra.mxu0 %v822
        %1386 = vmatprep.subr.mxu0 %v819
        %1387 = vmatpush2.msra.mxu0 %v818
        %1388 = vmatprep.subr.mxu0 %v815
        %1389 = vmatpush2.msra.mxu0 %v814
        %1390 = vmatprep.mubr.f32.mxu0 %v685
        %1391 = vmatmul.mubr.f32.gmra.mxu0 %v684
        %v1392 = vpop.f32.mrf.mxu0
        %v1393 = vadd.f32 0.0, %v1392
        %v1394 = vpop.f32.mrf.mxu0
        %v1395 = vadd.f32 0.0, %v1394
        %1396 = vmatprep.mubr.f32.mxu0 %v689
        %1397 = vmatmul.mubr.f32.gmra.mxu0 %v688
        %v1398 = vpop.f32.mrf.mxu0
        %v1399 = vadd.f32 0.0, %v1398
        %v1400 = vpop.f32.mrf.mxu0
        %v1401 = vadd.f32 0.0, %v1400
        %1402 = vmatprep.mubr.f32.mxu0 %v693
        %1403 = vmatmul.mubr.f32.gmra.mxu0 %v692
        %v1404 = vpop.f32.mrf.mxu0
        %v1405 = vadd.f32 0.0, %v1404
        %v1406 = vpop.f32.mrf.mxu0
        %v1407 = vadd.f32 0.0, %v1406
        %1408 = vmatprep.mubr.f32.mxu0 %v697
        %1409 = vmatmul.mubr.f32.gmra.mxu0 %v696
        %v1410 = vpop.f32.mrf.mxu0
        %v1411 = vadd.f32 0.0, %v1410
        %v1412 = vpop.f32.mrf.mxu0
        %v1413 = vadd.f32 0.0, %v1412
        %1414 = vmatprep.mubr.f32.mxu0 %v701
        %1415 = vmatmul.mubr.f32.gmra.mxu0 %v700
        %v1416 = vpop.f32.mrf.mxu0
        %v1417 = vadd.f32 0.0, %v1416
        %v1418 = vpop.f32.mrf.mxu0
        %v1419 = vadd.f32 0.0, %v1418
        %1420 = vmatprep.mubr.f32.mxu0 %v705
        %1421 = vmatmul.mubr.f32.gmra.mxu0 %v704
        %v1422 = vpop.f32.mrf.mxu0
        %v1423 = vadd.f32 0.0, %v1422
        %v1424 = vpop.f32.mrf.mxu0
        %v1425 = vadd.f32 0.0, %v1424
        %1426 = vmatprep.mubr.f32.mxu0 %v709
        %1427 = vmatmul.mubr.f32.gmra.mxu0 %v708
        %v1428 = vpop.f32.mrf.mxu0
        %v1429 = vadd.f32 0.0, %v1428
        %v1430 = vpop.f32.mrf.mxu0
        %v1431 = vadd.f32 0.0, %v1430
        %1432 = vmatprep.mubr.f32.mxu0 %v713
        %1433 = vmatmul.mubr.f32.gmra.mxu0 %v712
        %v1434 = vpop.f32.mrf.mxu0
        %v1435 = vadd.f32 0.0, %v1434
        %v1436 = vpop.f32.mrf.mxu0
        %v1437 = vadd.f32 0.0, %v1436
        %1438 = vmatprep.mubr.f32.mxu0 %v717
        %1439 = vmatmul.mubr.f32.gmra.mxu0 %v716
        %v1440 = vpop.f32.mrf.mxu0
        %v1441 = vadd.f32 0.0, %v1440
        %v1442 = vpop.f32.mrf.mxu0
        %v1443 = vadd.f32 0.0, %v1442
        %1444 = vmatprep.mubr.f32.mxu0 %v721
        %1445 = vmatmul.mubr.f32.gmra.mxu0 %v720
        %v1446 = vpop.f32.mrf.mxu0
        %v1447 = vadd.f32 0.0, %v1446
        %v1448 = vpop.f32.mrf.mxu0
        %v1449 = vadd.f32 0.0, %v1448
        %1450 = vmatprep.mubr.f32.mxu0 %v725
        %1451 = vmatmul.mubr.f32.gmra.mxu0 %v724
        %v1452 = vpop.f32.mrf.mxu0
        %v1453 = vadd.f32 0.0, %v1452
        %v1454 = vpop.f32.mrf.mxu0
        %v1455 = vadd.f32 0.0, %v1454
        %1456 = vmatprep.mubr.f32.mxu0 %v729
        %1457 = vmatmul.mubr.f32.gmra.mxu0 %v728
        %v1458 = vpop.f32.mrf.mxu0
        %v1459 = vadd.f32 0.0, %v1458
        %v1460 = vpop.f32.mrf.mxu0
        %v1461 = vadd.f32 0.0, %v1460
        %1462 = vmatprep.mubr.f32.mxu0 %v733
        %1463 = vmatmul.mubr.f32.gmra.mxu0 %v732
        %v1464 = vpop.f32.mrf.mxu0
        %v1465 = vadd.f32 0.0, %v1464
        %v1466 = vpop.f32.mrf.mxu0
        %v1467 = vadd.f32 0.0, %v1466
        %1468 = vmatprep.mubr.f32.mxu0 %v737
        %1469 = vmatmul.mubr.f32.gmra.mxu0 %v736
        %v1470 = vpop.f32.mrf.mxu0
        %v1471 = vadd.f32 0.0, %v1470
        %v1472 = vpop.f32.mrf.mxu0
        %v1473 = vadd.f32 0.0, %v1472
        %1474 = vmatprep.mubr.f32.mxu0 %v741
        %1475 = vmatmul.mubr.f32.gmra.mxu0 %v740
        %v1476 = vpop.f32.mrf.mxu0
        %v1477 = vadd.f32 0.0, %v1476
        %v1478 = vpop.f32.mrf.mxu0
        %v1479 = vadd.f32 0.0, %v1478
        %1480 = vmatprep.mubr.f32.mxu0 %v745
        %1481 = vmatmul.mubr.f32.gmra.mxu0 %v744
        %v1482 = vpop.f32.mrf.mxu0
        %v1483 = vadd.f32 0.0, %v1482
        %v1484 = vpop.f32.mrf.mxu0
        %v1485 = vadd.f32 0.0, %v1484
        %1486 = vdwg.mxu0
        %1487 = vmatprep.subr.mxu0 %v939
        %1488 = vmatpush1.msra.mxu0 %v938
        %1489 = vmatprep.subr.mxu0 %v935
        %1490 = vmatpush1.msra.mxu0 %v934
        %1491 = vmatprep.subr.mxu0 %v931
        %1492 = vmatpush1.msra.mxu0 %v930
        %1493 = vmatprep.subr.mxu0 %v927
        %1494 = vmatpush1.msra.mxu0 %v926
        %1495 = vmatprep.subr.mxu0 %v923
        %1496 = vmatpush1.msra.mxu0 %v922
        %1497 = vmatprep.subr.mxu0 %v919
        %1498 = vmatpush1.msra.mxu0 %v918
        %1499 = vmatprep.subr.mxu0 %v915
        %1500 = vmatpush1.msra.mxu0 %v914
        %1501 = vmatprep.subr.mxu0 %v911
        %1502 = vmatpush1.msra.mxu0 %v910
        %1503 = vmatprep.subr.mxu0 %v907
        %1504 = vmatpush1.msra.mxu0 %v906
        %1505 = vmatprep.subr.mxu0 %v903
        %1506 = vmatpush1.msra.mxu0 %v902
        %1507 = vmatprep.subr.mxu0 %v899
        %1508 = vmatpush1.msra.mxu0 %v898
        %1509 = vmatprep.subr.mxu0 %v895
        %1510 = vmatpush1.msra.mxu0 %v894
        %1511 = vmatprep.subr.mxu0 %v891
        %1512 = vmatpush1.msra.mxu0 %v890
        %1513 = vmatprep.subr.mxu0 %v887
        %1514 = vmatpush1.msra.mxu0 %v886
        %1515 = vmatprep.subr.mxu0 %v883
        %1516 = vmatpush1.msra.mxu0 %v882
        %1517 = vmatprep.subr.mxu0 %v879
        %1518 = vmatpush1.msra.mxu0 %v878
        %1519 = vmatprep.subr.mxu0 %v1003
        %1520 = vmatpush2.msra.mxu0 %v1002
        %1521 = vmatprep.subr.mxu0 %v999
        %1522 = vmatpush2.msra.mxu0 %v998
        %1523 = vmatprep.subr.mxu0 %v995
        %1524 = vmatpush2.msra.mxu0 %v994
        %1525 = vmatprep.subr.mxu0 %v991
        %1526 = vmatpush2.msra.mxu0 %v990
        %1527 = vmatprep.subr.mxu0 %v987
        %1528 = vmatpush2.msra.mxu0 %v986
        %1529 = vmatprep.subr.mxu0 %v983
        %1530 = vmatpush2.msra.mxu0 %v982
        %1531 = vmatprep.subr.mxu0 %v979
        %1532 = vmatpush2.msra.mxu0 %v978
        %1533 = vmatprep.subr.mxu0 %v975
        %1534 = vmatpush2.msra.mxu0 %v974
        %1535 = vmatprep.subr.mxu0 %v971
        %1536 = vmatpush2.msra.mxu0 %v970
        %1537 = vmatprep.subr.mxu0 %v967
        %1538 = vmatpush2.msra.mxu0 %v966
        %1539 = vmatprep.subr.mxu0 %v963
        %1540 = vmatpush2.msra.mxu0 %v962
        %1541 = vmatprep.subr.mxu0 %v959
        %1542 = vmatpush2.msra.mxu0 %v958
        %1543 = vmatprep.subr.mxu0 %v955
        %1544 = vmatpush2.msra.mxu0 %v954
        %1545 = vmatprep.subr.mxu0 %v951
        %1546 = vmatpush2.msra.mxu0 %v950
        %1547 = vmatprep.subr.mxu0 %v947
        %1548 = vmatpush2.msra.mxu0 %v946
        %1549 = vmatprep.subr.mxu0 %v943
        %1550 = vmatpush2.msra.mxu0 %v942
        %1551 = vmatprep.mubr.f32.mxu0 %v687
        %1552 = vmatmul.mubr.f32.gmra.mxu0 %v686
        %v1553 = vpop.f32.mrf.mxu0
        %v1554 = vadd.f32 %v1393, %v1553
        %v1555 = vpop.f32.mrf.mxu0
        %v1556 = vadd.f32 %v1395, %v1555
        %1557 = vmatprep.mubr.f32.mxu0 %v691
        %1558 = vmatmul.mubr.f32.gmra.mxu0 %v690
        %v1559 = vpop.f32.mrf.mxu0
        %v1560 = vadd.f32 %v1399, %v1559
        %v1561 = vpop.f32.mrf.mxu0
        %v1562 = vadd.f32 %v1401, %v1561
        %1563 = vmatprep.mubr.f32.mxu0 %v695
        %1564 = vmatmul.mubr.f32.gmra.mxu0 %v694
        %v1565 = vpop.f32.mrf.mxu0
        %v1566 = vadd.f32 %v1405, %v1565
        %v1567 = vpop.f32.mrf.mxu0
        %v1568 = vadd.f32 %v1407, %v1567
        %1569 = vmatprep.mubr.f32.mxu0 %v699
        %1570 = vmatmul.mubr.f32.gmra.mxu0 %v698
        %v1571 = vpop.f32.mrf.mxu0
        %v1572 = vadd.f32 %v1411, %v1571
        %v1573 = vpop.f32.mrf.mxu0
        %v1574 = vadd.f32 %v1413, %v1573
        %1575 = vmatprep.mubr.f32.mxu0 %v703
        %1576 = vmatmul.mubr.f32.gmra.mxu0 %v702
        %v1577 = vpop.f32.mrf.mxu0
        %v1578 = vadd.f32 %v1417, %v1577
        %v1579 = vpop.f32.mrf.mxu0
        %v1580 = vadd.f32 %v1419, %v1579
        %1581 = vmatprep.mubr.f32.mxu0 %v707
        %1582 = vmatmul.mubr.f32.gmra.mxu0 %v706
        %v1583 = vpop.f32.mrf.mxu0
        %v1584 = vadd.f32 %v1423, %v1583
        %v1585 = vpop.f32.mrf.mxu0
        %v1586 = vadd.f32 %v1425, %v1585
        %1587 = vmatprep.mubr.f32.mxu0 %v711
        %1588 = vmatmul.mubr.f32.gmra.mxu0 %v710
        %v1589 = vpop.f32.mrf.mxu0
        %v1590 = vadd.f32 %v1429, %v1589
        %v1591 = vpop.f32.mrf.mxu0
        %v1592 = vadd.f32 %v1431, %v1591
        %1593 = vmatprep.mubr.f32.mxu0 %v715
        %1594 = vmatmul.mubr.f32.gmra.mxu0 %v714
        %v1595 = vpop.f32.mrf.mxu0
        %v1596 = vadd.f32 %v1435, %v1595
        %v1597 = vpop.f32.mrf.mxu0
        %v1598 = vadd.f32 %v1437, %v1597
        %1599 = vmatprep.mubr.f32.mxu0 %v719
        %1600 = vmatmul.mubr.f32.gmra.mxu0 %v718
        %v1601 = vpop.f32.mrf.mxu0
        %v1602 = vadd.f32 %v1441, %v1601
        %v1603 = vpop.f32.mrf.mxu0
        %v1604 = vadd.f32 %v1443, %v1603
        %1605 = vmatprep.mubr.f32.mxu0 %v723
        %1606 = vmatmul.mubr.f32.gmra.mxu0 %v722
        %v1607 = vpop.f32.mrf.mxu0
        %v1608 = vadd.f32 %v1447, %v1607
        %v1609 = vpop.f32.mrf.mxu0
        %v1610 = vadd.f32 %v1449, %v1609
        %1611 = vmatprep.mubr.f32.mxu0 %v727
        %1612 = vmatmul.mubr.f32.gmra.mxu0 %v726
        %v1613 = vpop.f32.mrf.mxu0
        %v1614 = vadd.f32 %v1453, %v1613
        %v1615 = vpop.f32.mrf.mxu0
        %v1616 = vadd.f32 %v1455, %v1615
        %1617 = vmatprep.mubr.f32.mxu0 %v731
        %1618 = vmatmul.mubr.f32.gmra.mxu0 %v730
        %v1619 = vpop.f32.mrf.mxu0
        %v1620 = vadd.f32 %v1459, %v1619
        %v1621 = vpop.f32.mrf.mxu0
        %v1622 = vadd.f32 %v1461, %v1621
        %1623 = vmatprep.mubr.f32.mxu0 %v735
        %1624 = vmatmul.mubr.f32.gmra.mxu0 %v734
        %v1625 = vpop.f32.mrf.mxu0
        %v1626 = vadd.f32 %v1465, %v1625
        %v1627 = vpop.f32.mrf.mxu0
        %v1628 = vadd.f32 %v1467, %v1627
        %1629 = vmatprep.mubr.f32.mxu0 %v739
        %1630 = vmatmul.mubr.f32.gmra.mxu0 %v738
        %v1631 = vpop.f32.mrf.mxu0
        %v1632 = vadd.f32 %v1471, %v1631
        %v1633 = vpop.f32.mrf.mxu0
        %v1634 = vadd.f32 %v1473, %v1633
        %1635 = vmatprep.mubr.f32.mxu0 %v743
        %1636 = vmatmul.mubr.f32.gmra.mxu0 %v742
        %v1637 = vpop.f32.mrf.mxu0
        %v1638 = vadd.f32 %v1477, %v1637
        %v1639 = vpop.f32.mrf.mxu0
        %v1640 = vadd.f32 %v1479, %v1639
        %1641 = vmatprep.mubr.f32.mxu0 %v747
        %1642 = vmatmul.mubr.f32.gmra.mxu0 %v746
        %v1643 = vpop.f32.mrf.mxu0
        %v1644 = vadd.f32 %v1483, %v1643
        %v1645 = vpop.f32.mrf.mxu0
        %v1646 = vadd.f32 %v1485, %v1645
        %1647 = vdwg.mxu0
        %v1648 = vadd.f32 %v620, %v1232
        %v1649 = vadd.f32 %v621, %v1234
        %v1650 = vadd.f32 %v622, %v1554
        %v1651 = vadd.f32 %v623, %v1556
        %v1652 = vadd.f32 %v624, %v1238
        %v1653 = vadd.f32 %v625, %v1240
        %v1654 = vadd.f32 %v626, %v1560
        %v1655 = vadd.f32 %v627, %v1562
        %v1656 = vadd.f32 %v628, %v1244
        %v1657 = vadd.f32 %v629, %v1246
        %v1658 = vadd.f32 %v630, %v1566
        %v1659 = vadd.f32 %v631, %v1568
        %v1660 = vadd.f32 %v632, %v1250
        %v1661 = vadd.f32 %v633, %v1252
        %v1662 = vadd.f32 %v634, %v1572
        %v1663 = vadd.f32 %v635, %v1574
        %v1664 = vadd.f32 %v636, %v1256
        %v1665 = vadd.f32 %v637, %v1258
        %v1666 = vadd.f32 %v638, %v1578
        %v1667 = vadd.f32 %v639, %v1580
        %v1668 = vadd.f32 %v640, %v1262
        %v1669 = vadd.f32 %v641, %v1264
        %v1670 = vadd.f32 %v642, %v1584
        %v1671 = vadd.f32 %v643, %v1586
        %v1672 = vadd.f32 %v644, %v1268
        %v1673 = vadd.f32 %v645, %v1270
        %v1674 = vadd.f32 %v646, %v1590
        %v1675 = vadd.f32 %v647, %v1592
        %v1676 = vadd.f32 %v648, %v1274
        %v1677 = vadd.f32 %v649, %v1276
        %v1678 = vadd.f32 %v650, %v1596
        %v1679 = vadd.f32 %v651, %v1598
        %v1680 = vadd.f32 %v652, %v1280
        %v1681 = vadd.f32 %v653, %v1282
        %v1682 = vadd.f32 %v654, %v1602
        %v1683 = vadd.f32 %v655, %v1604
        %v1684 = vadd.f32 %v656, %v1286
        %v1685 = vadd.f32 %v657, %v1288
        %v1686 = vadd.f32 %v658, %v1608
        %v1687 = vadd.f32 %v659, %v1610
        %v1688 = vadd.f32 %v660, %v1292
        %v1689 = vadd.f32 %v661, %v1294
        %v1690 = vadd.f32 %v662, %v1614
        %v1691 = vadd.f32 %v663, %v1616
        %v1692 = vadd.f32 %v664, %v1298
        %v1693 = vadd.f32 %v665, %v1300
        %v1694 = vadd.f32 %v666, %v1620
        %v1695 = vadd.f32 %v667, %v1622
        %v1696 = vadd.f32 %v668, %v1304
        %v1697 = vadd.f32 %v669, %v1306
        %v1698 = vadd.f32 %v670, %v1626
        %v1699 = vadd.f32 %v671, %v1628
        %v1700 = vadd.f32 %v672, %v1310
        %v1701 = vadd.f32 %v673, %v1312
        %v1702 = vadd.f32 %v674, %v1632
        %v1703 = vadd.f32 %v675, %v1634
        %v1704 = vadd.f32 %v676, %v1316
        %v1705 = vadd.f32 %v677, %v1318
        %v1706 = vadd.f32 %v678, %v1638
        %v1707 = vadd.f32 %v679, %v1640
        %v1708 = vadd.f32 %v680, %v1322
        %v1709 = vadd.f32 %v681, %v1324
        %v1710 = vadd.f32 %v682, %v1644
        %v1711 = vadd.f32 %v683, %v1646
        %1712 = vst [vmem:[%s262] sm:$0xff] %v1648
        %1713 = vst [vmem:[%s262 + $0x8] sm:$0xff] %v1649
        %1714 = vst [vmem:[%s262 + $0x10] sm:$0xff] %v1650
        %1715 = vst [vmem:[%s262 + $0x18] sm:$0xff] %v1651
        %1716 = vst [vmem:[%s262 + $0x20] sm:$0xff] %v1652
        %1717 = vst [vmem:[%s262 + $0x28] sm:$0xff] %v1653
        %1718 = vst [vmem:[%s262 + $0x30] sm:$0xff] %v1654
        %1719 = vst [vmem:[%s262 + $0x38] sm:$0xff] %v1655
        %1720 = vst [vmem:[%s262 + $0x40] sm:$0xff] %v1656
        %1721 = vst [vmem:[%s262 + $0x48] sm:$0xff] %v1657
        %1722 = vst [vmem:[%s262 + $0x50] sm:$0xff] %v1658
        %1723 = vst [vmem:[%s262 + $0x58] sm:$0xff] %v1659
        %1724 = vst [vmem:[%s262 + $0x60] sm:$0xff] %v1660
        %1725 = vst [vmem:[%s262 + $0x68] sm:$0xff] %v1661
        %1726 = vst [vmem:[%s262 + $0x70] sm:$0xff] %v1662
        %1727 = vst [vmem:[%s262 + $0x78] sm:$0xff] %v1663
        %1728 = vst [vmem:[%s262 + $0x80] sm:$0xff] %v1664
        %1729 = vst [vmem:[%s262 + $0x88] sm:$0xff] %v1665
        %1730 = vst [vmem:[%s262 + $0x90] sm:$0xff] %v1666
        %1731 = vst [vmem:[%s262 + $0x98] sm:$0xff] %v1667
        %1732 = vst [vmem:[%s262 + $0xa0] sm:$0xff] %v1668
        %1733 = vst [vmem:[%s262 + $0xa8] sm:$0xff] %v1669
        %1734 = vst [vmem:[%s262 + $0xb0] sm:$0xff] %v1670
        %1735 = vst [vmem:[%s262 + $0xb8] sm:$0xff] %v1671
        %1736 = vst [vmem:[%s262 + $0xc0] sm:$0xff] %v1672
        %1737 = vst [vmem:[%s262 + $0xc8] sm:$0xff] %v1673
        %1738 = vst [vmem:[%s262 + $0xd0] sm:$0xff] %v1674
        %1739 = vst [vmem:[%s262 + $0xd8] sm:$0xff] %v1675
        %1740 = vst [vmem:[%s262 + $0xe0] sm:$0xff] %v1676
        %1741 = vst [vmem:[%s262 + $0xe8] sm:$0xff] %v1677
        %1742 = vst [vmem:[%s262 + $0xf0] sm:$0xff] %v1678
        %1743 = vst [vmem:[%s262 + $0xf8] sm:$0xff] %v1679
        %1744 = vst [vmem:[%s262 + $0x100] sm:$0xff] %v1680
        %1745 = vst [vmem:[%s262 + $0x108] sm:$0xff] %v1681
        %1746 = vst [vmem:[%s262 + $0x110] sm:$0xff] %v1682
        %1747 = vst [vmem:[%s262 + $0x118] sm:$0xff] %v1683
        %1748 = vst [vmem:[%s262 + $0x120] sm:$0xff] %v1684
        %1749 = vst [vmem:[%s262 + $0x128] sm:$0xff] %v1685
        %1750 = vst [vmem:[%s262 + $0x130] sm:$0xff] %v1686
        %1751 = vst [vmem:[%s262 + $0x138] sm:$0xff] %v1687
        %1752 = vst [vmem:[%s262 + $0x140] sm:$0xff] %v1688
        %1753 = vst [vmem:[%s262 + $0x148] sm:$0xff] %v1689
        %1754 = vst [vmem:[%s262 + $0x150] sm:$0xff] %v1690
        %1755 = vst [vmem:[%s262 + $0x158] sm:$0xff] %v1691
        %1756 = vst [vmem:[%s262 + $0x160] sm:$0xff] %v1692
        %1757 = vst [vmem:[%s262 + $0x168] sm:$0xff] %v1693
        %1758 = vst [vmem:[%s262 + $0x170] sm:$0xff] %v1694
        %1759 = vst [vmem:[%s262 + $0x178] sm:$0xff] %v1695
        %1760 = vst [vmem:[%s262 + $0x180] sm:$0xff] %v1696
        %1761 = vst [vmem:[%s262 + $0x188] sm:$0xff] %v1697
        %1762 = vst [vmem:[%s262 + $0x190] sm:$0xff] %v1698
        %1763 = vst [vmem:[%s262 + $0x198] sm:$0xff] %v1699
        %1764 = vst [vmem:[%s262 + $0x1a0] sm:$0xff] %v1700
        %1765 = vst [vmem:[%s262 + $0x1a8] sm:$0xff] %v1701
        %1766 = vst [vmem:[%s262 + $0x1b0] sm:$0xff] %v1702
        %1767 = vst [vmem:[%s262 + $0x1b8] sm:$0xff] %v1703
        %1768 = vst [vmem:[%s262 + $0x1c0] sm:$0xff] %v1704
        %1769 = vst [vmem:[%s262 + $0x1c8] sm:$0xff] %v1705
        %1770 = vst [vmem:[%s262 + $0x1d0] sm:$0xff] %v1706
        %1771 = vst [vmem:[%s262 + $0x1d8] sm:$0xff] %v1707
        %1772 = vst [vmem:[%s262 + $0x1e0] sm:$0xff] %v1708
        %1773 = vst [vmem:[%s262 + $0x1e8] sm:$0xff] %v1709
        %1774 = vst [vmem:[%s262 + $0x1f0] sm:$0xff] %v1710
        %1775 = vst [vmem:[%s262 + $0x1f8] sm:$0xff] %v1711
        %s1776 = sand.u32 %s132, 1
        %s1777 = scalar_lea.sflag [#allocation4], %s1776
        %s1778 = sand.u32 %s132, 1
        %s1779 = smul.addr %s1778, 512
        %s1780 = scalar_lea.vmem [#allocation8], %s1779
        // Predicated region
        $region53: #{tpu_custom_call.1} parent=31 // pred_check
          %p1781 = pneg %p142
        $region54: #{tpu_custom_call.1} parent=31 // pred_check_branch
          %1783 = sbr.rel (%p1781) target = $region56
        $region55: #{tpu_custom_call.1} parent=31 // pred_region
          %s1784 = smul.u32 16, %s26
          %s1785 = smul.u32 4, %s27
          %s1787 = ssub.s32 8192, 8192
          %1788 = vsyncadd %s1777, %s1787
          %s1789 = smul.addr %s1784, 4
          %s1790 = sadd.s32 %s1785, %s1789
          %s1791 = smul.addr %s1790, 128
          %s1792 = scalar_lea.hbm %s3, %s1791
          %s1793 = sshll.u32 %s1780, 4
          %s1794 = int_to_ptr.vmem [resolvable:$true] %s1793
          %1799 = dma.vmem_to_hbm [thread:$0]  %s1794, 8192, %s1792, %s1777, 512, 512, 32
        $region56: #{tpu_custom_call.1} parent=31 // pred_fallthru
          _
      $region32: #{tpu_custom_call.1} parent=5 // pred_fallthru
        _
      %p1800 = scmp.le.s32.totalorder 2, %s16
      // Predicated region
      $region57: #{tpu_custom_call.1} parent=5 // pred_check
        %p1801 = pneg %p1800
      $region58: #{tpu_custom_call.1} parent=5 // pred_check_branch
        %1803 = sbr.rel (%p1801) target = $region60
      $region59: #{tpu_custom_call.1} parent=5 // pred_region
        %s1804 = ssub.s32 %s16, 2
        // Predicated region
        $region61: #{tpu_custom_call.1} parent=59 // pred_check
          %p1805 = pneg %p148
        $region62: #{tpu_custom_call.1} parent=59 // pred_check_branch
          %1807 = sbr.rel (%p1805) target = $region64
        $region63: #{tpu_custom_call.1} parent=59 // pred_region
          %s1808 = sand.u32 %s133, 1
          %s1809 = scalar_lea.sflag [#allocation4], %s1808
          %s1810 = sand.u32 %s133, 1
          %s1811 = smul.addr %s1810, 512
          %s1812 = scalar_lea.vmem [#allocation8], %s1811
          %1813 = dma.done %s1809, 8192
        $region64: #{tpu_custom_call.1} parent=59 // pred_fallthru
          _
      $region60: #{tpu_custom_call.1} parent=5 // pred_fallthru
        _
    $region6: #{tpu_custom_call.1} parent=1 // loop_footer
      %s20 = sadd.s32 1, %s16
    $region7: #{tpu_custom_call.1} parent=1 // loop_footer_branch
      %15 = sbr.rel target = $region3
    $region8: #{tpu_custom_call.1} parent=1 // loop_exit
      _
    %1814 = vsyncpa [#allocation3], 1
    %s1815 = scalar_lea.sflag [#allocation3], 1
    %1816 = vsyncpa %s1815, 1
    %1817 = vsyncpa [#allocation6], 1
    %1818 = vsyncpa [#allocation4], 1
    %s1819 = scalar_lea.sflag [#allocation4], 1
    %1820 = vsyncpa %s1819, 1

</llo_original>
